<compile_context>
chip_gen: v7x
topology: tpu7x:2x2x1
jax: 0.10.0
libtpu: 0.0.40
codegen_flags: <defaults>
</compile_context>

<pallas_src>
import functools
import math

import jax
import jax.numpy as jnp
from jax import lax
from jax.experimental import pallas as pl
from jax.experimental.pallas import tpu as pltpu


# ----------------------------------------------------------------------------
# helpers
# ----------------------------------------------------------------------------
def _pick_tile(dim, candidates):
    """Largest candidate that divides `dim`; else the full dim (always legal)."""
    for c in candidates:
        if c <= dim and dim % c == 0:
            return c
    return dim


# ----------------------------------------------------------------------------
# Tiled linear kernels: out = x @ w (+ b), f32 accumulator in VMEM scratch
# ----------------------------------------------------------------------------
def _linear_kernel(x_ref, w_ref, o_ref, acc_ref):
    @pl.when(pl.program_id(2) == 0)
    def _():
        acc_ref[...] = jnp.zeros_like(acc_ref)

    acc_ref[...] += jnp.dot(x_ref[...], w_ref[...],
                            preferred_element_type=jnp.float32)

    @pl.when(pl.program_id(2) == pl.num_programs(2) - 1)
    def _():
        o_ref[...] = acc_ref[...].astype(o_ref.dtype)


def _linear_bias_kernel(x_ref, w_ref, b_ref, o_ref, acc_ref):
    @pl.when(pl.program_id(2) == 0)
    def _():
        acc_ref[...] = jnp.zeros_like(acc_ref)

    acc_ref[...] += jnp.dot(x_ref[...], w_ref[...],
                            preferred_element_type=jnp.float32)

    @pl.when(pl.program_id(2) == pl.num_programs(2) - 1)
    def _():
        o_ref[...] = (acc_ref[...]
                      + b_ref[...].astype(jnp.float32)).astype(o_ref.dtype)


def pallas_linear(x2d, w, bias=None):
    """x2d: (M, K), w: (K, N), bias: (N,) or None -> (M, N)."""
    M, K = x2d.shape
    Kw, N = w.shape
    assert K == Kw
    tm = _pick_tile(M, (256, 128, 64, 32, 16, 8))
    tn = _pick_tile(N, (512, 384, 256, 128))
    tk = _pick_tile(K, (512, 256, 128))
    grid = (M // tm, N // tn, K // tk)

    x_spec = pl.BlockSpec((tm, tk), lambda i, j, k: (i, k))
    w_spec = pl.BlockSpec((tk, tn), lambda i, j, k: (k, j))
    o_spec = pl.BlockSpec((tm, tn), lambda i, j, k: (i, j))
    cparams = pltpu.CompilerParams(
        dimension_semantics=("parallel", "parallel", "arbitrary"))
    out_shape = jax.ShapeDtypeStruct((M, N), x2d.dtype)
    scratch = [pltpu.VMEM((tm, tn), jnp.float32)]

    if bias is None:
        return pl.pallas_call(
            _linear_kernel,
            out_shape=out_shape,
            grid=grid,
            in_specs=[x_spec, w_spec],
            out_specs=o_spec,
            scratch_shapes=scratch,
            compiler_params=cparams,
        )(x2d, w)

    b2d = bias.reshape(1, N)
    b_spec = pl.BlockSpec((1, tn), lambda i, j, k: (0, j))
    return pl.pallas_call(
        _linear_bias_kernel,
        out_shape=out_shape,
        grid=grid,
        in_specs=[x_spec, w_spec, b_spec],
        out_specs=o_spec,
        scratch_shapes=scratch,
        compiler_params=cparams,
    )(x2d, w, b2d)


# ----------------------------------------------------------------------------
# Attention kernels: one batch element (all heads) per grid step.
# ----------------------------------------------------------------------------
def _mha_block(get_q, get_k, get_v, heads, scale, out_dtype):
    """Per-head softmax(q k^T * scale) @ v; returns lane-dense (N, heads*D)."""
    outs = []
    for h in range(heads):                      # static unroll (heads is small)
        q = get_q(h).astype(jnp.float32) * scale        # scale on (N, D), not (N, M)
        k = get_k(h).astype(jnp.float32)
        v = get_v(h)
        # contract on D of both operands -> no k.T relayout before the MXU
        sim = lax.dot_general(q, k, (((1,), (1,)), ((), ())),
                              preferred_element_type=jnp.float32)   # (N, M)
        m = jnp.max(sim, axis=-1, keepdims=True)
        p = jnp.exp(sim - m)
        denom = jnp.sum(p, axis=-1, keepdims=True)
        attn = (p * pl.reciprocal(denom, approx=True)).astype(v.dtype)
        outs.append(jnp.dot(attn, v, preferred_element_type=jnp.float32))
    return jnp.concatenate(outs, axis=-1).astype(out_dtype)         # (N, H*D)


def _self_attn_kernel(qkv_ref, o_ref, *, heads, dim_head, scale):
    inner = heads * dim_head
    qkv = qkv_ref[0]                            # (N, 3*inner) packed q | k | v
    o_ref[0] = _mha_block(
        lambda h: qkv[:, h * dim_head:(h + 1) * dim_head],
        lambda h: qkv[:, inner + h * dim_head: inner + (h + 1) * dim_head],
        lambda h: qkv[:, 2 * inner + h * dim_head: 2 * inner + (h + 1) * dim_head],
        heads, scale, o_ref.dtype)


def _cross_attn_kernel(q_ref, kv_ref, o_ref, *, heads, dim_head, scale):
    inner = heads * dim_head
    q = q_ref[0]                                # (N, inner)
    kv = kv_ref[0]                              # (M, 2*inner) packed k | v
    o_ref[0] = _mha_block(
        lambda h: q[:, h * dim_head:(h + 1) * dim_head],
        lambda h: kv[:, h * dim_head:(h + 1) * dim_head],
        lambda h: kv[:, inner + h * dim_head: inner + (h + 1) * dim_head],
        heads, scale, o_ref.dtype)


def pallas_self_attention(qkv, heads, dim_head, scale):
    """qkv: (B, N, 3*inner) packed projections -> (B, N, inner)."""
    B, N, C = qkv.shape
    inner = heads * dim_head
    assert C == 3 * inner
    kern = functools.partial(_self_attn_kernel, heads=heads,
                             dim_head=dim_head, scale=scale)
    itemsize = jnp.dtype(qkv.dtype).itemsize
    cost = pl.CostEstimate(
        flops=int(4 * B * heads * N * N * dim_head),
        transcendentals=int(B * heads * N * N),
        bytes_accessed=int((qkv.size + B * N * inner) * itemsize))
    return pl.pallas_call(
        kern,
        out_shape=jax.ShapeDtypeStruct((B, N, inner), qkv.dtype),
        grid=(B,),
        in_specs=[pl.BlockSpec((1, N, C), lambda b: (b, 0, 0))],
        out_specs=pl.BlockSpec((1, N, inner), lambda b: (b, 0, 0)),
        compiler_params=pltpu.CompilerParams(dimension_semantics=("parallel",)),
        cost_estimate=cost,
    )(qkv)


def pallas_cross_attention(q, kv, heads, dim_head, scale):
    """q: (B, N, inner), kv: (B, M, 2*inner) -> (B, N, inner)."""
    B, N, Ci = q.shape
    Bk, M, Ckv = kv.shape
    inner = heads * dim_head
    assert Ci == inner and Ckv == 2 * inner and Bk == B
    kern = functools.partial(_cross_attn_kernel, heads=heads,
                             dim_head=dim_head, scale=scale)
    itemsize = jnp.dtype(q.dtype).itemsize
    cost = pl.CostEstimate(
        flops=int(4 * B * heads * N * M * dim_head),
        transcendentals=int(B * heads * N * M),
        bytes_accessed=int((q.size + kv.size + B * N * inner) * itemsize))
    return pl.pallas_call(
        kern,
        out_shape=jax.ShapeDtypeStruct((B, N, inner), q.dtype),
        grid=(B,),
        in_specs=[pl.BlockSpec((1, N, inner), lambda b: (b, 0, 0)),
                  pl.BlockSpec((1, M, 2 * inner), lambda b: (b, 0, 0))],
        out_specs=pl.BlockSpec((1, N, inner), lambda b: (b, 0, 0)),
        compiler_params=pltpu.CompilerParams(dimension_semantics=("parallel",)),
        cost_estimate=cost,
    )(q, kv)


# ----------------------------------------------------------------------------
# DimProjAttention forward
# ----------------------------------------------------------------------------
def dim_proj_attention_forward(params, x, context=None, *, heads, dim_head):
    """x: (B, N, query_dim); context: (B, M, context_dim) or None.
    Returns (B, N, query_dim). mask is not supported; Dropout(0.0) is identity."""
    scale = dim_head ** (-0.5)
    inner = heads * dim_head
    B, N, Dq = x.shape

    if context is None:
        # Fused q/kv projection: a single tiled matmul reads x once.
        w_qkv = jnp.concatenate([params["w_q"], params["w_kv"]], axis=1)  # (Dq, 3*inner)
        qkv = pallas_linear(x.reshape(B * N, Dq), w_qkv).reshape(B, N, 3 * inner)
        out = pallas_self_attention(qkv, heads, dim_head, scale)          # (B, N, inner)
    else:
        Bc, M, Dc = context.shape
        assert Bc == B, "batch mismatch between x and context"
        q = pallas_linear(x.reshape(B * N, Dq), params["w_q"]).reshape(B, N, inner)
        kv = pallas_linear(context.reshape(Bc * M, Dc),
                           params["w_kv"]).reshape(B, M, 2 * inner)
        out = pallas_cross_attention(q, kv, heads, dim_head, scale)       # (B, N, inner)

    # to_out: Linear(inner, query_dim) with bias; Dropout(0.0) is identity.
    y = pallas_linear(out.reshape(B * N, inner), params["w_out"], params["b_out"])
    return y.reshape(B, N, Dq)


# ----------------------------------------------------------------------------
# Pure-JAX reference (mirrors the PyTorch module)
# ----------------------------------------------------------------------------
def reference_forward(params, x, context=None, *, heads, dim_head):
    scale = dim_head ** (-0.5)
    inner = heads * dim_head
    if context is None:
        context = x
    B, N, _ = x.shape
    M = context.shape[1]
    qq = x @ params["w_q"]
    kv = context @ params["w_kv"]
    k, v = kv[..., :inner], kv[..., inner:]

    def sh(t, n_tok):
        return jnp.transpose(
            t.reshape(B, n_tok, heads, dim_head), (0, 2, 1, 3)
        ).reshape(B * heads, n_tok, dim_head)

    qh, kh, vh = sh(qq, N), sh(k, M), sh(v, M)
    sim = jnp.einsum("bid,bjd->bij", qh, kh) * scale
    attn = jax.nn.softmax(sim, axis=-1)
    out = jnp.einsum("bij,bjd->bid", attn, vh)
    out = jnp.transpose(
        out.reshape(B, heads, N, dim_head), (0, 2, 1, 3)
    ).reshape(B, N, inner)
    return out @ params["w_out"] + params["b_out"]


# ----------------------------------------------------------------------------
if __name__ == "__main__":
    # Small shapes consistent with the module's forward.
    B, N, M = 2, 8, 16            # batch, query length, context length
    query_dim = 32
    heads, dim_head = 8, 16       # inner_dim = 128 -> lane-dense attention output
    inner_dim = heads * dim_head

    key = jax.random.PRNGKey(0)
    kx, kc, kq, kkv, kwo, kbo = jax.random.split(key, 6)

    # Weights stored as (in_features, out_features), PyTorch stores the transpose.
    params = {
        "w_q": jax.random.normal(kq, (query_dim, inner_dim), jnp.float32)
        * (1.0 / math.sqrt(query_dim)),
        "w_kv": jax.random.normal(kkv, (query_dim, 2 * inner_dim), jnp.float32)
        * (1.0 / math.sqrt(query_dim)),
        "w_out": jax.random.normal(kwo, (inner_dim, query_dim), jnp.float32)
        * (1.0 / math.sqrt(inner_dim)),
        "b_out": jax.random.normal(kbo, (query_dim,), jnp.float32) * 0.01,
    }

    x = jax.random.normal(kx, (B, N, query_dim), jnp.float32)
    ctx = jax.random.normal(kc, (B, M, query_dim), jnp.float32)

    fwd = jax.jit(functools.partial(dim_proj_attention_forward,
                                    heads=heads, dim_head=dim_head))

    y_self = jax.block_until_ready(fwd(params, x))        # self-attention path
    y_cross = jax.block_until_ready(fwd(params, x, ctx))  # cross-attention path

    y_self_ref = reference_forward(params, x, heads=heads, dim_head=dim_head)
    y_cross_ref = reference_forward(params, x, ctx, heads=heads, dim_head=dim_head)

    assert y_self.shape == (B, N, query_dim)
    assert y_cross.shape == (B, N, query_dim)
    # Tolerance covers the approximate (EUP) reciprocal in the softmax denominator.
    assert jnp.allclose(y_self, y_self_ref, atol=1e-2, rtol=1e-2), \
        "self-attention mismatch vs reference"
    assert jnp.allclose(y_cross, y_cross_ref, atol=1e-2, rtol=1e-2), \
        "cross-attention mismatch vs reference"

    print("KERNEL_OK")
</pallas_src>

<mosaic_0001>
module attributes {stable_mosaic.version = 11 : i64} {
  func.func @_linear_kernel(%arg0: i32, %arg1: i32, %arg2: i32, %arg3: memref<16x32xf32, #tpu.memory_space<vmem>>, %arg4: memref<32x384xf32, #tpu.memory_space<vmem>>, %arg5: memref<16x384xf32, #tpu.memory_space<vmem>>, %arg6: memref<16x384xf32, #tpu.memory_space<vmem>>) attributes {dimension_semantics = [#tpu.dimension_semantics<parallel>, #tpu.dimension_semantics<parallel>, #tpu.dimension_semantics<arbitrary>], iteration_bounds = array<i64: 1, 1, 1>, scalar_prefetch = 0 : i64, scratch_operands = 1 : i64, tpu.core_type = #tpu.core_type<tc>, window_params = [{transform_indices = @transform_0, window_bounds = array<i64: 16, 32>}, {transform_indices = @transform_1, window_bounds = array<i64: 32, 384>}, {transform_indices = @transform_2, window_bounds = array<i64: 16, 384>}]} {
    %c0_i32 = arith.constant 0 : i32
    %0 = arith.cmpi eq, %arg2, %c0_i32 : i32
    %1 = arith.extui %0 : i1 to i32
    %c0_i32_0 = arith.constant 0 : i32
    %2 = arith.cmpi ne, %1, %c0_i32_0 : i32
    scf.if %2 {
      %cst_10 = arith.constant 0.000000e+00 : f32
      %12 = vector.broadcast %cst_10 : f32 to vector<16x384xf32>
      %c0_11 = arith.constant 0 : index
      %c0_12 = arith.constant 0 : index
      %13 = vector.load %arg6[%c0_11, %c0_12] : memref<16x384xf32, #tpu.memory_space<vmem>>, vector<16x384xf32>
      tpu.vector_store %arg6[%c0_11, %c0_12], %12 {strides = array<i32>} : memref<16x384xf32, #tpu.memory_space<vmem>>, vector<16x384xf32>,
    } else {
    }
    %c0 = arith.constant 0 : index
    %c0_1 = arith.constant 0 : index
    %3 = vector.load %arg6[%c0, %c0_1] : memref<16x384xf32, #tpu.memory_space<vmem>>, vector<16x384xf32>
    %c0_2 = arith.constant 0 : index
    %c0_3 = arith.constant 0 : index
    %4 = vector.load %arg3[%c0_2, %c0_3] : memref<16x32xf32, #tpu.memory_space<vmem>>, vector<16x32xf32>
    %c0_4 = arith.constant 0 : index
    %c0_5 = arith.constant 0 : index
    %5 = vector.load %arg4[%c0_4, %c0_5] : memref<32x384xf32, #tpu.memory_space<vmem>>, vector<32x384xf32>
    %cst = arith.constant dense<0.000000e+00> : vector<16x384xf32>
    %6 = tpu.matmul %4, %5, %cst {dimension_numbers = #tpu.dot_dimension_numbers<[1], [0], [0], [1], [0, 0, 1, 1], [], []>} : vector<16x32xf32>, vector<32x384xf32>, vector<16x384xf32> -> vector<16x384xf32>
    %7 = arith.addf %3, %6 : vector<16x384xf32>
    %c0_6 = arith.constant 0 : index
    %c0_7 = arith.constant 0 : index
    %8 = vector.load %arg6[%c0_6, %c0_7] : memref<16x384xf32, #tpu.memory_space<vmem>>, vector<16x384xf32>
    tpu.vector_store %arg6[%c0_6, %c0_7], %7 {strides = array<i32>} : memref<16x384xf32, #tpu.memory_space<vmem>>, vector<16x384xf32>,
    %c0_i32_8 = arith.constant 0 : i32
    %9 = arith.cmpi eq, %arg2, %c0_i32_8 : i32
    %10 = arith.extui %9 : i1 to i32
    %c0_i32_9 = arith.constant 0 : i32
    %11 = arith.cmpi ne, %10, %c0_i32_9 : i32
    scf.if %11 {
      %c0_10 = arith.constant 0 : index
      %c0_11 = arith.constant 0 : index
      %12 = vector.load %arg6[%c0_10, %c0_11] : memref<16x384xf32, #tpu.memory_space<vmem>>, vector<16x384xf32>
      %c0_12 = arith.constant 0 : index
      %c0_13 = arith.constant 0 : index
      %13 = vector.load %arg5[%c0_12, %c0_13] : memref<16x384xf32, #tpu.memory_space<vmem>>, vector<16x384xf32>
      tpu.vector_store %arg5[%c0_12, %c0_13], %12 {strides = array<i32>} : memref<16x384xf32, #tpu.memory_space<vmem>>, vector<16x384xf32>,
    } else {
    }
    return
  }
  func.func @transform_0(%arg0: i32, %arg1: i32, %arg2: i32) -> (i32, i32) {
    %c0_i32 = arith.constant 0 : i32
    return %arg0, %arg2 : i32, i32
  }
  func.func @transform_1(%arg0: i32, %arg1: i32, %arg2: i32) -> (i32, i32) {
    %c0_i32 = arith.constant 0 : i32
    return %arg2, %arg1 : i32, i32
  }
  func.func @transform_2(%arg0: i32, %arg1: i32, %arg2: i32) -> (i32, i32) {
    %c0_i32 = arith.constant 0 : i32
    return %arg0, %arg1 : i32, i32
  }
}

module attributes {stable_mosaic.version = 11 : i64} {
  func.func @_self_attn_kernel(%arg0: i32, %arg1: memref<1x8x384xf32, #tpu.memory_space<vmem>>, %arg2: memref<1x8x128xf32, #tpu.memory_space<vmem>>) attributes {dimension_semantics = [#tpu.dimension_semantics<parallel>], iteration_bounds = array<i64: 2>, scalar_prefetch = 0 : i64, scratch_operands = 0 : i64, tpu.core_type = #tpu.core_type<tc>, window_params = [{transform_indices = @transform_0, window_bounds = array<i64: 1, 8, 384>}, {transform_indices = @transform_1, window_bounds = array<i64: 1, 8, 128>}]} {
    %c0 = arith.constant 0 : index
    %c0_0 = arith.constant 0 : index
    %c0_1 = arith.constant 0 : index
    %0 = vector.load %arg1[%c0, %c0_0, %c0_1] : memref<1x8x384xf32, #tpu.memory_space<vmem>>, vector<1x8x384xf32>
    %1 = vector.shape_cast %0 : vector<1x8x384xf32> to vector<8x384xf32>
    %2 = vector.extract_strided_slice %1 {offsets = [0, 0], sizes = [8, 16], strides = [1, 1]} : vector<8x384xf32> to vector<8x16xf32>
    %cst = arith.constant 2.500000e-01 : f32
    %3 = vector.broadcast %cst : f32 to vector<8x16xf32>
    %4 = arith.mulf %2, %3 : vector<8x16xf32>
    %5 = vector.extract_strided_slice %1 {offsets = [0, 128], sizes = [8, 16], strides = [1, 1]} : vector<8x384xf32> to vector<8x16xf32>
    %6 = vector.extract_strided_slice %1 {offsets = [0, 256], sizes = [8, 16], strides = [1, 1]} : vector<8x384xf32> to vector<8x16xf32>
    %cst_2 = arith.constant dense<0.000000e+00> : vector<8x8xf32>
    %7 = tpu.matmul %4, %5, %cst_2 {dimension_numbers = #tpu.dot_dimension_numbers<[1], [1], [0], [0], [0, 0, 1, 0], [], []>} : vector<8x16xf32>, vector<8x16xf32>, vector<8x8xf32> -> vector<8x8xf32>
    %cst_3 = arith.constant dense<0xFF800000> : vector<8xf32>
    %8 = vector.multi_reduction <maximumf>, %7, %cst_3 [1] : vector<8x8xf32> to vector<8xf32>
    %9 = vector.shape_cast %8 : vector<8xf32> to vector<8x1xf32>
    %10 = vector.broadcast %9 : vector<8x1xf32> to vector<8x8xf32>
    %11 = arith.subf %7, %10 : vector<8x8xf32>
    %12 = math.exp %11 : vector<8x8xf32>
    %cst_4 = arith.constant dense<0.000000e+00> : vector<8xf32>
    %13 = vector.multi_reduction <add>, %12, %cst_4 [1] : vector<8x8xf32> to vector<8xf32>
    %14 = vector.shape_cast %13 : vector<8xf32> to vector<8x1xf32>
    %15 = tpu.reciprocal %14 {approx = true} : vector<8x1xf32> -> vector<8x1xf32>
    %16 = vector.broadcast %15 : vector<8x1xf32> to vector<8x8xf32>
    %17 = arith.mulf %12, %16 : vector<8x8xf32>
    %cst_5 = arith.constant dense<0.000000e+00> : vector<8x16xf32>
    %18 = tpu.matmul %17, %6, %cst_5 {dimension_numbers = #tpu.dot_dimension_numbers<[1], [0], [0], [1], [0, 0, 1, 1], [], []>} : vector<8x8xf32>, vector<8x16xf32>, vector<8x16xf32> -> vector<8x16xf32>
    %19 = vector.extract_strided_slice %1 {offsets = [0, 16], sizes = [8, 16], strides = [1, 1]} : vector<8x384xf32> to vector<8x16xf32>
    %cst_6 = arith.constant 2.500000e-01 : f32
    %20 = vector.broadcast %cst_6 : f32 to vector<8x16xf32>
    %21 = arith.mulf %19, %20 : vector<8x16xf32>
    %22 = vector.extract_strided_slice %1 {offsets = [0, 144], sizes = [8, 16], strides = [1, 1]} : vector<8x384xf32> to vector<8x16xf32>
    %23 = vector.extract_strided_slice %1 {offsets = [0, 272], sizes = [8, 16], strides = [1, 1]} : vector<8x384xf32> to vector<8x16xf32>
    %cst_7 = arith.constant dense<0.000000e+00> : vector<8x8xf32>
    %24 = tpu.matmul %21, %22, %cst_7 {dimension_numbers = #tpu.dot_dimension_numbers<[1], [1], [0], [0], [0, 0, 1, 0], [], []>} : vector<8x16xf32>, vector<8x16xf32>, vector<8x8xf32> -> vector<8x8xf32>
    %cst_8 = arith.constant dense<0xFF800000> : vector<8xf32>
    %25 = vector.multi_reduction <maximumf>, %24, %cst_8 [1] : vector<8x8xf32> to vector<8xf32>
    %26 = vector.shape_cast %25 : vector<8xf32> to vector<8x1xf32>
    %27 = vector.broadcast %26 : vector<8x1xf32> to vector<8x8xf32>
    %28 = arith.subf %24, %27 : vector<8x8xf32>
    %29 = math.exp %28 : vector<8x8xf32>
    %cst_9 = arith.constant dense<0.000000e+00> : vector<8xf32>
    %30 = vector.multi_reduction <add>, %29, %cst_9 [1] : vector<8x8xf32> to vector<8xf32>
    %31 = vector.shape_cast %30 : vector<8xf32> to vector<8x1xf32>
    %32 = tpu.reciprocal %31 {approx = true} : vector<8x1xf32> -> vector<8x1xf32>
    %33 = vector.broadcast %32 : vector<8x1xf32> to vector<8x8xf32>
    %34 = arith.mulf %29, %33 : vector<8x8xf32>
    %cst_10 = arith.constant dense<0.000000e+00> : vector<8x16xf32>
    %35 = tpu.matmul %34, %23, %cst_10 {dimension_numbers = #tpu.dot_dimension_numbers<[1], [0], [0], [1], [0, 0, 1, 1], [], []>} : vector<8x8xf32>, vector<8x16xf32>, vector<8x16xf32> -> vector<8x16xf32>
    %36 = vector.extract_strided_slice %1 {offsets = [0, 32], sizes = [8, 16], strides = [1, 1]} : vector<8x384xf32> to vector<8x16xf32>
    %cst_11 = arith.constant 2.500000e-01 : f32
    %37 = vector.broadcast %cst_11 : f32 to vector<8x16xf32>
    %38 = arith.mulf %36, %37 : vector<8x16xf32>
    %39 = vector.extract_strided_slice %1 {offsets = [0, 160], sizes = [8, 16], strides = [1, 1]} : vector<8x384xf32> to vector<8x16xf32>
    %40 = vector.extract_strided_slice %1 {offsets = [0, 288], sizes = [8, 16], strides = [1, 1]} : vector<8x384xf32> to vector<8x16xf32>
    %cst_12 = arith.constant dense<0.000000e+00> : vector<8x8xf32>
    %41 = tpu.matmul %38, %39, %cst_12 {dimension_numbers = #tpu.dot_dimension_numbers<[1], [1], [0], [0], [0, 0, 1, 0], [], []>} : vector<8x16xf32>, vector<8x16xf32>, vector<8x8xf32> -> vector<8x8xf32>
    %cst_13 = arith.constant dense<0xFF800000> : vector<8xf32>
    %42 = vector.multi_reduction <maximumf>, %41, %cst_13 [1] : vector<8x8xf32> to vector<8xf32>
    %43 = vector.shape_cast %42 : vector<8xf32> to vector<8x1xf32>
    %44 = vector.broadcast %43 : vector<8x1xf32> to vector<8x8xf32>
    %45 = arith.subf %41, %44 : vector<8x8xf32>
    %46 = math.exp %45 : vector<8x8xf32>
    %cst_14 = arith.constant dense<0.000000e+00> : vector<8xf32>
    %47 = vector.multi_reduction <add>, %46, %cst_14 [1] : vector<8x8xf32> to vector<8xf32>
    %48 = vector.shape_cast %47 : vector<8xf32> to vector<8x1xf32>
    %49 = tpu.reciprocal %48 {approx = true} : vector<8x1xf32> -> vector<8x1xf32>
    %50 = vector.broadcast %49 : vector<8x1xf32> to vector<8x8xf32>
    %51 = arith.mulf %46, %50 : vector<8x8xf32>
    %cst_15 = arith.constant dense<0.000000e+00> : vector<8x16xf32>
    %52 = tpu.matmul %51, %40, %cst_15 {dimension_numbers = #tpu.dot_dimension_numbers<[1], [0], [0], [1], [0, 0, 1, 1], [], []>} : vector<8x8xf32>, vector<8x16xf32>, vector<8x16xf32> -> vector<8x16xf32>
    %53 = vector.extract_strided_slice %1 {offsets = [0, 48], sizes = [8, 16], strides = [1, 1]} : vector<8x384xf32> to vector<8x16xf32>
    %cst_16 = arith.constant 2.500000e-01 : f32
    %54 = vector.broadcast %cst_16 : f32 to vector<8x16xf32>
    %55 = arith.mulf %53, %54 : vector<8x16xf32>
    %56 = vector.extract_strided_slice %1 {offsets = [0, 176], sizes = [8, 16], strides = [1, 1]} : vector<8x384xf32> to vector<8x16xf32>
    %57 = vector.extract_strided_slice %1 {offsets = [0, 304], sizes = [8, 16], strides = [1, 1]} : vector<8x384xf32> to vector<8x16xf32>
    %cst_17 = arith.constant dense<0.000000e+00> : vector<8x8xf32>
    %58 = tpu.matmul %55, %56, %cst_17 {dimension_numbers = #tpu.dot_dimension_numbers<[1], [1], [0], [0], [0, 0, 1, 0], [], []>} : vector<8x16xf32>, vector<8x16xf32>, vector<8x8xf32> -> vector<8x8xf32>
    %cst_18 = arith.constant dense<0xFF800000> : vector<8xf32>
    %59 = vector.multi_reduction <maximumf>, %58, %cst_18 [1] : vector<8x8xf32> to vector<8xf32>
    %60 = vector.shape_cast %59 : vector<8xf32> to vector<8x1xf32>
    %61 = vector.broadcast %60 : vector<8x1xf32> to vector<8x8xf32>
    %62 = arith.subf %58, %61 : vector<8x8xf32>
    %63 = math.exp %62 : vector<8x8xf32>
    %cst_19 = arith.constant dense<0.000000e+00> : vector<8xf32>
    %64 = vector.multi_reduction <add>, %63, %cst_19 [1] : vector<8x8xf32> to vector<8xf32>
    %65 = vector.shape_cast %64 : vector<8xf32> to vector<8x1xf32>
    %66 = tpu.reciprocal %65 {approx = true} : vector<8x1xf32> -> vector<8x1xf32>
    %67 = vector.broadcast %66 : vector<8x1xf32> to vector<8x8xf32>
    %68 = arith.mulf %63, %67 : vector<8x8xf32>
    %cst_20 = arith.constant dense<0.000000e+00> : vector<8x16xf32>
    %69 = tpu.matmul %68, %57, %cst_20 {dimension_numbers = #tpu.dot_dimension_numbers<[1], [0], [0], [1], [0, 0, 1, 1], [], []>} : vector<8x8xf32>, vector<8x16xf32>, vector<8x16xf32> -> vector<8x16xf32>
    %70 = vector.extract_strided_slice %1 {offsets = [0, 64], sizes = [8, 16], strides = [1, 1]} : vector<8x384xf32> to vector<8x16xf32>
    %cst_21 = arith.constant 2.500000e-01 : f32
    %71 = vector.broadcast %cst_21 : f32 to vector<8x16xf32>
    %72 = arith.mulf %70, %71 : vector<8x16xf32>
    %73 = vector.extract_strided_slice %1 {offsets = [0, 192], sizes = [8, 16], strides = [1, 1]} : vector<8x384xf32> to vector<8x16xf32>
    %74 = vector.extract_strided_slice %1 {offsets = [0, 320], sizes = [8, 16], strides = [1, 1]} : vector<8x384xf32> to vector<8x16xf32>
    %cst_22 = arith.constant dense<0.000000e+00> : vector<8x8xf32>
    %75 = tpu.matmul %72, %73, %cst_22 {dimension_numbers = #tpu.dot_dimension_numbers<[1], [1], [0], [0], [0, 0, 1, 0], [], []>} : vector<8x16xf32>, vector<8x16xf32>, vector<8x8xf32> -> vector<8x8xf32>
    %cst_23 = arith.constant dense<0xFF800000> : vector<8xf32>
    %76 = vector.multi_reduction <maximumf>, %75, %cst_23 [1] : vector<8x8xf32> to vector<8xf32>
    %77 = vector.shape_cast %76 : vector<8xf32> to vector<8x1xf32>
    %78 = vector.broadcast %77 : vector<8x1xf32> to vector<8x8xf32>
    %79 = arith.subf %75, %78 : vector<8x8xf32>
    %80 = math.exp %79 : vector<8x8xf32>
    %cst_24 = arith.constant dense<0.000000e+00> : vector<8xf32>
    %81 = vector.multi_reduction <add>, %80, %cst_24 [1] : vector<8x8xf32> to vector<8xf32>
    %82 = vector.shape_cast %81 : vector<8xf32> to vector<8x1xf32>
    %83 = tpu.reciprocal %82 {approx = true} : vector<8x1xf32> -> vector<8x1xf32>
    %84 = vector.broadcast %83 : vector<8x1xf32> to vector<8x8xf32>
    %85 = arith.mulf %80, %84 : vector<8x8xf32>
    %cst_25 = arith.constant dense<0.000000e+00> : vector<8x16xf32>
    %86 = tpu.matmul %85, %74, %cst_25 {dimension_numbers = #tpu.dot_dimension_numbers<[1], [0], [0], [1], [0, 0, 1, 1], [], []>} : vector<8x8xf32>, vector<8x16xf32>, vector<8x16xf32> -> vector<8x16xf32>
    %87 = vector.extract_strided_slice %1 {offsets = [0, 80], sizes = [8, 16], strides = [1, 1]} : vector<8x384xf32> to vector<8x16xf32>
    %cst_26 = arith.constant 2.500000e-01 : f32
    %88 = vector.broadcast %cst_26 : f32 to vector<8x16xf32>
    %89 = arith.mulf %87, %88 : vector<8x16xf32>
    %90 = vector.extract_strided_slice %1 {offsets = [0, 208], sizes = [8, 16], strides = [1, 1]} : vector<8x384xf32> to vector<8x16xf32>
    %91 = vector.extract_strided_slice %1 {offsets = [0, 336], sizes = [8, 16], strides = [1, 1]} : vector<8x384xf32> to vector<8x16xf32>
    %cst_27 = arith.constant dense<0.000000e+00> : vector<8x8xf32>
    %92 = tpu.matmul %89, %90, %cst_27 {dimension_numbers = #tpu.dot_dimension_numbers<[1], [1], [0], [0], [0, 0, 1, 0], [], []>} : vector<8x16xf32>, vector<8x16xf32>, vector<8x8xf32> -> vector<8x8xf32>
    %cst_28 = arith.constant dense<0xFF800000> : vector<8xf32>
    %93 = vector.multi_reduction <maximumf>, %92, %cst_28 [1] : vector<8x8xf32> to vector<8xf32>
    %94 = vector.shape_cast %93 : vector<8xf32> to vector<8x1xf32>
    %95 = vector.broadcast %94 : vector<8x1xf32> to vector<8x8xf32>
    %96 = arith.subf %92, %95 : vector<8x8xf32>
    %97 = math.exp %96 : vector<8x8xf32>
    %cst_29 = arith.constant dense<0.000000e+00> : vector<8xf32>
    %98 = vector.multi_reduction <add>, %97, %cst_29 [1] : vector<8x8xf32> to vector<8xf32>
    %99 = vector.shape_cast %98 : vector<8xf32> to vector<8x1xf32>
    %100 = tpu.reciprocal %99 {approx = true} : vector<8x1xf32> -> vector<8x1xf32>
    %101 = vector.broadcast %100 : vector<8x1xf32> to vector<8x8xf32>
    %102 = arith.mulf %97, %101 : vector<8x8xf32>
    %cst_30 = arith.constant dense<0.000000e+00> : vector<8x16xf32>
    %103 = tpu.matmul %102, %91, %cst_30 {dimension_numbers = #tpu.dot_dimension_numbers<[1], [0], [0], [1], [0, 0, 1, 1], [], []>} : vector<8x8xf32>, vector<8x16xf32>, vector<8x16xf32> -> vector<8x16xf32>
    %104 = vector.extract_strided_slice %1 {offsets = [0, 96], sizes = [8, 16], strides = [1, 1]} : vector<8x384xf32> to vector<8x16xf32>
    %cst_31 = arith.constant 2.500000e-01 : f32
    %105 = vector.broadcast %cst_31 : f32 to vector<8x16xf32>
    %106 = arith.mulf %104, %105 : vector<8x16xf32>
    %107 = vector.extract_strided_slice %1 {offsets = [0, 224], sizes = [8, 16], strides = [1, 1]} : vector<8x384xf32> to vector<8x16xf32>
    %108 = vector.extract_strided_slice %1 {offsets = [0, 352], sizes = [8, 16], strides = [1, 1]} : vector<8x384xf32> to vector<8x16xf32>
    %cst_32 = arith.constant dense<0.000000e+00> : vector<8x8xf32>
    %109 = tpu.matmul %106, %107, %cst_32 {dimension_numbers = #tpu.dot_dimension_numbers<[1], [1], [0], [0], [0, 0, 1, 0], [], []>} : vector<8x16xf32>, vector<8x16xf32>, vector<8x8xf32> -> vector<8x8xf32>
    %cst_33 = arith.constant dense<0xFF800000> : vector<8xf32>
    %110 = vector.multi_reduction <maximumf>, %109, %cst_33 [1] : vector<8x8xf32> to vector<8xf32>
    %111 = vector.shape_cast %110 : vector<8xf32> to vector<8x1xf32>
    %112 = vector.broadcast %111 : vector<8x1xf32> to vector<8x8xf32>
    %113 = arith.subf %109, %112 : vector<8x8xf32>
    %114 = math.exp %113 : vector<8x8xf32>
    %cst_34 = arith.constant dense<0.000000e+00> : vector<8xf32>
    %115 = vector.multi_reduction <add>, %114, %cst_34 [1] : vector<8x8xf32> to vector<8xf32>
    %116 = vector.shape_cast %115 : vector<8xf32> to vector<8x1xf32>
    %117 = tpu.reciprocal %116 {approx = true} : vector<8x1xf32> -> vector<8x1xf32>
    %118 = vector.broadcast %117 : vector<8x1xf32> to vector<8x8xf32>
    %119 = arith.mulf %114, %118 : vector<8x8xf32>
    %cst_35 = arith.constant dense<0.000000e+00> : vector<8x16xf32>
    %120 = tpu.matmul %119, %108, %cst_35 {dimension_numbers = #tpu.dot_dimension_numbers<[1], [0], [0], [1], [0, 0, 1, 1], [], []>} : vector<8x8xf32>, vector<8x16xf32>, vector<8x16xf32> -> vector<8x16xf32>
    %121 = vector.extract_strided_slice %1 {offsets = [0, 112], sizes = [8, 16], strides = [1, 1]} : vector<8x384xf32> to vector<8x16xf32>
    %cst_36 = arith.constant 2.500000e-01 : f32
    %122 = vector.broadcast %cst_36 : f32 to vector<8x16xf32>
    %123 = arith.mulf %121, %122 : vector<8x16xf32>
    %124 = vector.extract_strided_slice %1 {offsets = [0, 240], sizes = [8, 16], strides = [1, 1]} : vector<8x384xf32> to vector<8x16xf32>
    %125 = vector.extract_strided_slice %1 {offsets = [0, 368], sizes = [8, 16], strides = [1, 1]} : vector<8x384xf32> to vector<8x16xf32>
    %cst_37 = arith.constant dense<0.000000e+00> : vector<8x8xf32>
    %126 = tpu.matmul %123, %124, %cst_37 {dimension_numbers = #tpu.dot_dimension_numbers<[1], [1], [0], [0], [0, 0, 1, 0], [], []>} : vector<8x16xf32>, vector<8x16xf32>, vector<8x8xf32> -> vector<8x8xf32>
    %cst_38 = arith.constant dense<0xFF800000> : vector<8xf32>
    %127 = vector.multi_reduction <maximumf>, %126, %cst_38 [1] : vector<8x8xf32> to vector<8xf32>
    %128 = vector.shape_cast %127 : vector<8xf32> to vector<8x1xf32>
    %129 = vector.broadcast %128 : vector<8x1xf32> to vector<8x8xf32>
    %130 = arith.subf %126, %129 : vector<8x8xf32>
    %131 = math.exp %130 : vector<8x8xf32>
    %cst_39 = arith.constant dense<0.000000e+00> : vector<8xf32>
    %132 = vector.multi_reduction <add>, %131, %cst_39 [1] : vector<8x8xf32> to vector<8xf32>
    %133 = vector.shape_cast %132 : vector<8xf32> to vector<8x1xf32>
    %134 = tpu.reciprocal %133 {approx = true} : vector<8x1xf32> -> vector<8x1xf32>
    %135 = vector.broadcast %134 : vector<8x1xf32> to vector<8x8xf32>
    %136 = arith.mulf %131, %135 : vector<8x8xf32>
    %cst_40 = arith.constant dense<0.000000e+00> : vector<8x16xf32>
    %137 = tpu.matmul %136, %125, %cst_40 {dimension_numbers = #tpu.dot_dimension_numbers<[1], [0], [0], [1], [0, 0, 1, 1], [], []>} : vector<8x8xf32>, vector<8x16xf32>, vector<8x16xf32> -> vector<8x16xf32>
    %138 = tpu.concatenate %18, %35, %52, %69, %86, %103, %120, %137 in 1 : vector<8x16xf32>, vector<8x16xf32>, vector<8x16xf32>, vector<8x16xf32>, vector<8x16xf32>, vector<8x16xf32>, vector<8x16xf32>, vector<8x16xf32> -> vector<8x128xf32>
    %c0_41 = arith.constant 0 : index
    %c0_42 = arith.constant 0 : index
    %c0_43 = arith.constant 0 : index
    %139 = vector.load %arg2[%c0_41, %c0_42, %c0_43] : memref<1x8x128xf32, #tpu.memory_space<vmem>>, vector<1x8x128xf32>
    %140 = vector.shape_cast %139 : vector<1x8x128xf32> to vector<8x128xf32>
    %141 = vector.shape_cast %138 : vector<8x128xf32> to vector<1x8x128xf32>
    tpu.vector_store %arg2[%c0_41, %c0_42, %c0_43], %141 {strides = array<i32>} : memref<1x8x128xf32, #tpu.memory_space<vmem>>, vector<1x8x128xf32>,
    return
  }
  func.func @transform_0(%arg0: i32) -> (i32, i32, i32) {
    %c0_i32 = arith.constant 0 : i32
    %c0_i32_0 = arith.constant 0 : i32
    %c0_i32_1 = arith.constant 0 : i32
    return %arg0, %c0_i32, %c0_i32_0 : i32, i32, i32
  }
  func.func @transform_1(%arg0: i32) -> (i32, i32, i32) {
    %c0_i32 = arith.constant 0 : i32
    %c0_i32_0 = arith.constant 0 : i32
    %c0_i32_1 = arith.constant 0 : i32
    return %arg0, %c0_i32, %c0_i32_0 : i32, i32, i32
  }
}

module attributes {stable_mosaic.version = 11 : i64} {
  func.func @_linear_bias_kernel(%arg0: i32, %arg1: i32, %arg2: i32, %arg3: memref<16x128xf32, #tpu.memory_space<vmem>>, %arg4: memref<128x32xf32, #tpu.memory_space<vmem>>, %arg5: memref<1x32xf32, #tpu.memory_space<vmem>>, %arg6: memref<16x32xf32, #tpu.memory_space<vmem>>, %arg7: memref<16x32xf32, #tpu.memory_space<vmem>>) attributes {dimension_semantics = [#tpu.dimension_semantics<parallel>, #tpu.dimension_semantics<parallel>, #tpu.dimension_semantics<arbitrary>], iteration_bounds = array<i64: 1, 1, 1>, scalar_prefetch = 0 : i64, scratch_operands = 1 : i64, tpu.core_type = #tpu.core_type<tc>, window_params = [{transform_indices = @transform_0, window_bounds = array<i64: 16, 128>}, {transform_indices = @transform_1, window_bounds = array<i64: 128, 32>}, {transform_indices = @transform_2, window_bounds = array<i64: 1, 32>}, {transform_indices = @transform_3, window_bounds = array<i64: 16, 32>}]} {
    %c0_i32 = arith.constant 0 : i32
    %0 = arith.cmpi eq, %arg2, %c0_i32 : i32
    %1 = arith.extui %0 : i1 to i32
    %c0_i32_0 = arith.constant 0 : i32
    %2 = arith.cmpi ne, %1, %c0_i32_0 : i32
    scf.if %2 {
      %cst_10 = arith.constant 0.000000e+00 : f32
      %12 = vector.broadcast %cst_10 : f32 to vector<16x32xf32>
      %c0_11 = arith.constant 0 : index
      %c0_12 = arith.constant 0 : index
      %13 = vector.load %arg7[%c0_11, %c0_12] : memref<16x32xf32, #tpu.memory_space<vmem>>, vector<16x32xf32>
      tpu.vector_store %arg7[%c0_11, %c0_12], %12 {strides = array<i32>} : memref<16x32xf32, #tpu.memory_space<vmem>>, vector<16x32xf32>,
    } else {
    }
    %c0 = arith.constant 0 : index
    %c0_1 = arith.constant 0 : index
    %3 = vector.load %arg7[%c0, %c0_1] : memref<16x32xf32, #tpu.memory_space<vmem>>, vector<16x32xf32>
    %c0_2 = arith.constant 0 : index
    %c0_3 = arith.constant 0 : index
    %4 = vector.load %arg3[%c0_2, %c0_3] : memref<16x128xf32, #tpu.memory_space<vmem>>, vector<16x128xf32>
    %c0_4 = arith.constant 0 : index
    %c0_5 = arith.constant 0 : index
    %5 = vector.load %arg4[%c0_4, %c0_5] : memref<128x32xf32, #tpu.memory_space<vmem>>, vector<128x32xf32>
    %cst = arith.constant dense<0.000000e+00> : vector<16x32xf32>
    %6 = tpu.matmul %4, %5, %cst {dimension_numbers = #tpu.dot_dimension_numbers<[1], [0], [0], [1], [0, 0, 1, 1], [], []>} : vector<16x128xf32>, vector<128x32xf32>, vector<16x32xf32> -> vector<16x32xf32>
    %7 = arith.addf %3, %6 : vector<16x32xf32>
    %c0_6 = arith.constant 0 : index
    %c0_7 = arith.constant 0 : index
    %8 = vector.load %arg7[%c0_6, %c0_7] : memref<16x32xf32, #tpu.memory_space<vmem>>, vector<16x32xf32>
    tpu.vector_store %arg7[%c0_6, %c0_7], %7 {strides = array<i32>} : memref<16x32xf32, #tpu.memory_space<vmem>>, vector<16x32xf32>,
    %c0_i32_8 = arith.constant 0 : i32
    %9 = arith.cmpi eq, %arg2, %c0_i32_8 : i32
    %10 = arith.extui %9 : i1 to i32
    %c0_i32_9 = arith.constant 0 : i32
    %11 = arith.cmpi ne, %10, %c0_i32_9 : i32
    scf.if %11 {
      %c0_10 = arith.constant 0 : index
      %c0_11 = arith.constant 0 : index
      %12 = vector.load %arg7[%c0_10, %c0_11] : memref<16x32xf32, #tpu.memory_space<vmem>>, vector<16x32xf32>
      %c0_12 = arith.constant 0 : index
      %c0_13 = arith.constant 0 : index
      %13 = vector.load %arg5[%c0_12, %c0_13] : memref<1x32xf32, #tpu.memory_space<vmem>>, vector<1x32xf32>
      %14 = vector.broadcast %13 : vector<1x32xf32> to vector<16x32xf32>
      %15 = arith.addf %12, %14 : vector<16x32xf32>
      %c0_14 = arith.constant 0 : index
      %c0_15 = arith.constant 0 : index
      %16 = vector.load %arg6[%c0_14, %c0_15] : memref<16x32xf32, #tpu.memory_space<vmem>>, vector<16x32xf32>
      tpu.vector_store %arg6[%c0_14, %c0_15], %15 {strides = array<i32>} : memref<16x32xf32, #tpu.memory_space<vmem>>, vector<16x32xf32>,
    } else {
    }
    return
  }
  func.func @transform_0(%arg0: i32, %arg1: i32, %arg2: i32) -> (i32, i32) {
    %c0_i32 = arith.constant 0 : i32
    return %arg0, %arg2 : i32, i32
  }
  func.func @transform_1(%arg0: i32, %arg1: i32, %arg2: i32) -> (i32, i32) {
    %c0_i32 = arith.constant 0 : i32
    return %arg2, %arg1 : i32, i32
  }
  func.func @transform_2(%arg0: i32, %arg1: i32, %arg2: i32) -> (i32, i32) {
    %c0_i32 = arith.constant 0 : i32
    %c0_i32_0 = arith.constant 0 : i32
    return %c0_i32, %arg1 : i32, i32
  }
  func.func @transform_3(%arg0: i32, %arg1: i32, %arg2: i32) -> (i32, i32) {
    %c0_i32 = arith.constant 0 : i32
    return %arg0, %arg1 : i32, i32
  }
}

</mosaic_0001>

<llo_original>
// kernel: dim_proj_attention_forward.3
$region0: #{dim_proj_attention_forward.3}
  #allocation0 [shape = 'u32[]', space=smem, size = 0x4, offset = 0x4, fixed_abs, tag = 'smem constant byte address 0x4 - core index']
  #allocation1 [shape = 'u32[144,128]{1,0:T(1,128)}', space=vmem, size = 0x12000, scoped, tag = 'internal scratch']
  #allocation2 [shape = 'f32[16,384]{1,0:T(8,128)}', space=vmem, size = 0x6000, scoped, tag = 'scratch operand']
  %s0 = inlined_call_operand.vmem [shape: f32[16,32], index: 0, kind: input, shape index: {}]
  %s1 = inlined_call_operand.vmem [shape: f32[32,384], index: 1, kind: input, shape index: {}]
  %s2 = inlined_call_operand.vmem [shape: f32[16,384], index: 2, kind: output, shape index: {}]
  %s3 = sld [smem:[#allocation0]]
  $region26: #{dim_proj_attention_forward.3} parent=0
    _
  %s5 = ssub.s32 1, %s3
  %s6 = scalar_select 0, %s5, %s3
  // Predicated region
  $region2: #{dim_proj_attention_forward.3} parent=0 // pred_check
    _
  $region3: #{dim_proj_attention_forward.3} parent=0 // pred_check_branch
    %8 = sbr.rel (0) target = $region5
  $region4: #{dim_proj_attention_forward.3} parent=0 // pred_region
    _
  $region5: #{dim_proj_attention_forward.3} parent=0 // pred_fallthru
    _
  // Predicated region
  $region6: #{dim_proj_attention_forward.3} parent=0 // pred_check
    _
  $region7: #{dim_proj_attention_forward.3} parent=0 // pred_check_branch
    %10 = sbr.rel (0) target = $region9
  $region8: #{dim_proj_attention_forward.3} parent=0 // pred_region
    _
  $region9: #{dim_proj_attention_forward.3} parent=0 // pred_fallthru
    _
  %p11 = scmp.eq.s32.totalorder 0, 0
  // Predicated region
  $region10: #{dim_proj_attention_forward.3} parent=0 // pred_check
    %p12 = pneg %p11
  $region11: #{dim_proj_attention_forward.3} parent=0 // pred_check_branch
    %14 = sbr.rel (%p12) target = $region13
  $region12: #{dim_proj_attention_forward.3} parent=0 // pred_region
    %15 = vst [vmem:[#allocation2] sm:$0xff] 0.0
    %16 = vst [vmem:[#allocation2 + $0x8] sm:$0xff] 0.0
    %17 = vst [vmem:[#allocation2 + $0x10] sm:$0xff] 0.0
    %18 = vst [vmem:[#allocation2 + $0x18] sm:$0xff] 0.0
    %19 = vst [vmem:[#allocation2 + $0x20] sm:$0xff] 0.0
    %20 = vst [vmem:[#allocation2 + $0x28] sm:$0xff] 0.0
  $region13: #{dim_proj_attention_forward.3} parent=0 // pred_fallthru
    _
  %v21 = vld [vmem:[#allocation2] sm:$0xff]
  %v22 = vld [vmem:[#allocation2 + $0x8] sm:$0xff]
  %v23 = vld [vmem:[#allocation2 + $0x10] sm:$0xff]
  %v24 = vld [vmem:[#allocation2 + $0x18] sm:$0xff]
  %v25 = vld [vmem:[#allocation2 + $0x20] sm:$0xff]
  %v26 = vld [vmem:[#allocation2 + $0x28] sm:$0xff]
  %v27 = vld [vmem:[%s0] sm:$0xff]
  %v28 = vld [vmem:[%s0 + $0x8] sm:$0xff]
  %v29 = vld [vmem:[%s1] sm:$0xff]
  %v30 = vld [vmem:[%s1 + $0x8] sm:$0xff]
  %v31 = vld [vmem:[%s1 + $0x10] sm:$0xff]
  %v32 = vld [vmem:[%s1 + $0x18] sm:$0xff]
  %v33 = vld [vmem:[%s1 + $0x20] sm:$0xff]
  %v34 = vld [vmem:[%s1 + $0x28] sm:$0xff]
  %v35 = vld [vmem:[%s1 + $0x30] sm:$0xff]
  %v36 = vld [vmem:[%s1 + $0x38] sm:$0xff]
  %v37 = vld [vmem:[%s1 + $0x40] sm:$0xff]
  %v38 = vld [vmem:[%s1 + $0x48] sm:$0xff]
  %v39 = vld [vmem:[%s1 + $0x50] sm:$0xff]
  %v40 = vld [vmem:[%s1 + $0x58] sm:$0xff]
  %vm41 = vcmask 261120
  %v43 = vsel %vm41, %v27, 0
  %v46 = vsel %vm41, %v28, 0
  %48 = vmatprep.subr.mxu0 %v30
  %49 = vmatpush1.msra.mxu0 %v29
  %50 = vmatprep.subr.mxu0 %v33
  %51 = vmatpush1.msra.mxu0 %v32
  %52 = vmatprep.subr.mxu0 %v36
  %53 = vmatpush1.msra.mxu0 %v35
  %54 = vmatprep.subr.mxu0 %v39
  %55 = vmatpush1.msra.mxu0 %v38
  %56 = vmatprep.subr.mxu0 0.0
  %57 = vmatpush1.msra.mxu0 0.0
  %58 = vmatprep.subr.mxu0 0.0
  %59 = vmatpush1.msra.mxu0 0.0
  %60 = vmatprep.subr.mxu0 0.0
  %61 = vmatpush1.msra.mxu0 0.0
  %62 = vmatprep.subr.mxu0 0.0
  %63 = vmatpush1.msra.mxu0 0.0
  %64 = vmatprep.subr.mxu0 0.0
  %65 = vmatpush1.msra.mxu0 0.0
  %66 = vmatprep.subr.mxu0 0.0
  %67 = vmatpush1.msra.mxu0 0.0
  %68 = vmatprep.subr.mxu0 0.0
  %69 = vmatpush1.msra.mxu0 0.0
  %70 = vmatprep.subr.mxu0 0.0
  %71 = vmatpush1.msra.mxu0 0.0
  %72 = vmatprep.subr.mxu0 0.0
  %73 = vmatpush1.msra.mxu0 0.0
  %74 = vmatprep.subr.mxu0 0.0
  %75 = vmatpush1.msra.mxu0 0.0
  %76 = vmatprep.subr.mxu0 0.0
  %77 = vmatpush1.msra.mxu0 0.0
  %78 = vmatprep.subr.mxu0 0.0
  %79 = vmatpush1.msra.mxu0 0.0
  %80 = vmatprep.subr.mxu0 0.0
  %81 = vmatpush1.msra.mxu0 0.0
  %82 = vmatprep.subr.mxu0 0.0
  %83 = vmatpush1.msra.mxu0 0.0
  %84 = vmatprep.subr.mxu0 0.0
  %85 = vmatpush1.msra.mxu0 0.0
  %86 = vmatprep.subr.mxu0 0.0
  %87 = vmatpush1.msra.mxu0 0.0
  %88 = vmatprep.subr.mxu0 0.0
  %89 = vmatpush1.msra.mxu0 0.0
  %90 = vmatprep.subr.mxu0 0.0
  %91 = vmatpush1.msra.mxu0 0.0
  %92 = vmatprep.subr.mxu0 0.0
  %93 = vmatpush1.msra.mxu0 0.0
  %94 = vmatprep.subr.mxu0 0.0
  %95 = vmatpush1.msra.mxu0 0.0
  %96 = vmatprep.subr.mxu0 0.0
  %97 = vmatpush1.msra.mxu0 0.0
  %98 = vmatprep.subr.mxu0 0.0
  %99 = vmatpush1.msra.mxu0 0.0
  %100 = vmatprep.subr.mxu0 0.0
  %101 = vmatpush1.msra.mxu0 0.0
  %102 = vmatprep.subr.mxu0 0.0
  %103 = vmatpush1.msra.mxu0 0.0
  %104 = vmatprep.subr.mxu0 0.0
  %105 = vmatpush1.msra.mxu0 0.0
  %106 = vmatprep.subr.mxu0 0.0
  %107 = vmatpush1.msra.mxu0 0.0
  %108 = vmatprep.subr.mxu0 0.0
  %109 = vmatpush1.msra.mxu0 0.0
  %110 = vmatprep.subr.mxu0 0.0
  %111 = vmatpush1.msra.mxu0 0.0
  %112 = vmatprep.mubr.f32.mxu0 0.0
  %113 = vmatmul.mubr.f32.gmra.mrb[0].mxu0 %v43
  %v114 = vpop.f32.mrb[0].mxu0
  %v115 = vadd.f32 0.0, %v114
  %v116 = vpop.f32.mrb[0].mxu0
  %v117 = vadd.f32 0.0, %v116
  %118 = vmatprep.mubr.f32.mxu0 0.0
  %119 = vmatmul.mubr.f32.gmra.mrb[0].mxu0 %v46
  %v120 = vpop.f32.mrb[0].mxu0
  %v121 = vadd.f32 0.0, %v120
  %v122 = vpop.f32.mrb[0].mxu0
  %v123 = vadd.f32 0.0, %v122
  %124 = vdwg.mxu0
  %125 = vmatprep.subr.mxu0 0.0
  %126 = vmatpush1.msra.mxu0 %v31
  %127 = vmatprep.subr.mxu0 0.0
  %128 = vmatpush1.msra.mxu0 %v34
  %129 = vmatprep.subr.mxu0 0.0
  %130 = vmatpush1.msra.mxu0 %v37
  %131 = vmatprep.subr.mxu0 0.0
  %132 = vmatpush1.msra.mxu0 %v40
  %133 = vmatprep.subr.mxu0 0.0
  %134 = vmatpush1.msra.mxu0 0.0
  %135 = vmatprep.subr.mxu0 0.0
  %136 = vmatpush1.msra.mxu0 0.0
  %137 = vmatprep.subr.mxu0 0.0
  %138 = vmatpush1.msra.mxu0 0.0
  %139 = vmatprep.subr.mxu0 0.0
  %140 = vmatpush1.msra.mxu0 0.0
  %141 = vmatprep.subr.mxu0 0.0
  %142 = vmatpush1.msra.mxu0 0.0
  %143 = vmatprep.subr.mxu0 0.0
  %144 = vmatpush1.msra.mxu0 0.0
  %145 = vmatprep.subr.mxu0 0.0
  %146 = vmatpush1.msra.mxu0 0.0
  %147 = vmatprep.subr.mxu0 0.0
  %148 = vmatpush1.msra.mxu0 0.0
  %149 = vmatprep.subr.mxu0 0.0
  %150 = vmatpush1.msra.mxu0 0.0
  %151 = vmatprep.subr.mxu0 0.0
  %152 = vmatpush1.msra.mxu0 0.0
  %153 = vmatprep.subr.mxu0 0.0
  %154 = vmatpush1.msra.mxu0 0.0
  %155 = vmatprep.subr.mxu0 0.0
  %156 = vmatpush1.msra.mxu0 0.0
  %157 = vmatprep.subr.mxu0 0.0
  %158 = vmatpush1.msra.mxu0 0.0
  %159 = vmatprep.subr.mxu0 0.0
  %160 = vmatpush1.msra.mxu0 0.0
  %161 = vmatprep.subr.mxu0 0.0
  %162 = vmatpush1.msra.mxu0 0.0
  %163 = vmatprep.subr.mxu0 0.0
  %164 = vmatpush1.msra.mxu0 0.0
  %165 = vmatprep.subr.mxu0 0.0
  %166 = vmatpush1.msra.mxu0 0.0
  %167 = vmatprep.subr.mxu0 0.0
  %168 = vmatpush1.msra.mxu0 0.0
  %169 = vmatprep.subr.mxu0 0.0
  %170 = vmatpush1.msra.mxu0 0.0
  %171 = vmatprep.subr.mxu0 0.0
  %172 = vmatpush1.msra.mxu0 0.0
  %173 = vmatprep.subr.mxu0 0.0
  %174 = vmatpush1.msra.mxu0 0.0
  %175 = vmatprep.subr.mxu0 0.0
  %176 = vmatpush1.msra.mxu0 0.0
  %177 = vmatprep.subr.mxu0 0.0
  %178 = vmatpush1.msra.mxu0 0.0
  %179 = vmatprep.subr.mxu0 0.0
  %180 = vmatpush1.msra.mxu0 0.0
  %181 = vmatprep.subr.mxu0 0.0
  %182 = vmatpush1.msra.mxu0 0.0
  %183 = vmatprep.subr.mxu0 0.0
  %184 = vmatpush1.msra.mxu0 0.0
  %185 = vmatprep.subr.mxu0 0.0
  %186 = vmatpush1.msra.mxu0 0.0
  %187 = vmatprep.subr.mxu0 0.0
  %188 = vmatpush1.msra.mxu0 0.0
  %189 = vmatprep.mubr.f32.mxu0 0.0
  %190 = vmatmul.mubr.f32.gmra.mrb[0].mxu0 %v43
  %v191 = vpop.f32.mrb[0].mxu0
  %v192 = vadd.f32 0.0, %v191
  %v193 = vpop.f32.mrb[0].mxu0
  %194 = vmatprep.mubr.f32.mxu0 0.0
  %195 = vmatmul.mubr.f32.gmra.mrb[0].mxu0 %v46
  %v196 = vpop.f32.mrb[0].mxu0
  %v197 = vadd.f32 0.0, %v196
  %v198 = vpop.f32.mrb[0].mxu0
  %199 = vdwg.mxu0
  %v200 = vadd.f32 %v21, %v115
  %v201 = vadd.f32 %v22, %v117
  %v202 = vadd.f32 %v23, %v192
  %v203 = vadd.f32 %v24, %v121
  %v204 = vadd.f32 %v25, %v123
  %v205 = vadd.f32 %v26, %v197
  %206 = vst [vmem:[#allocation2] sm:$0xff] %v200
  %207 = vst [vmem:[#allocation2 + $0x8] sm:$0xff] %v201
  %208 = vst [vmem:[#allocation2 + $0x10] sm:$0xff] %v202
  %209 = vst [vmem:[#allocation2 + $0x18] sm:$0xff] %v203
  %210 = vst [vmem:[#allocation2 + $0x20] sm:$0xff] %v204
  %211 = vst [vmem:[#allocation2 + $0x28] sm:$0xff] %v205
  // Predicated region
  $region14: #{dim_proj_attention_forward.3} parent=0 // pred_check
    %p212 = pneg %p11
  $region15: #{dim_proj_attention_forward.3} parent=0 // pred_check_branch
    %214 = sbr.rel (%p212) target = $region17
  $region16: #{dim_proj_attention_forward.3} parent=0 // pred_region
    %v215 = vld [vmem:[#allocation2] sm:$0xff]
    %v216 = vld [vmem:[#allocation2 + $0x8] sm:$0xff]
    %v217 = vld [vmem:[#allocation2 + $0x10] sm:$0xff]
    %v218 = vld [vmem:[#allocation2 + $0x18] sm:$0xff]
    %v219 = vld [vmem:[#allocation2 + $0x20] sm:$0xff]
    %v220 = vld [vmem:[#allocation2 + $0x28] sm:$0xff]
    %221 = vst [vmem:[%s2] sm:$0xff] %v215
    %222 = vst [vmem:[%s2 + $0x8] sm:$0xff] %v216
    %223 = vst [vmem:[%s2 + $0x10] sm:$0xff] %v217
    %224 = vst [vmem:[%s2 + $0x18] sm:$0xff] %v218
    %225 = vst [vmem:[%s2 + $0x20] sm:$0xff] %v219
    %226 = vst [vmem:[%s2 + $0x28] sm:$0xff] %v220
  $region17: #{dim_proj_attention_forward.3} parent=0 // pred_fallthru
    _
  // Predicated region
  $region18: #{dim_proj_attention_forward.3} parent=0 // pred_check
    _
  $region19: #{dim_proj_attention_forward.3} parent=0 // pred_check_branch
    %228 = sbr.rel (0) target = $region21
  $region20: #{dim_proj_attention_forward.3} parent=0 // pred_region
    _
  $region21: #{dim_proj_attention_forward.3} parent=0 // pred_fallthru
    _
  // Predicated region
  $region22: #{dim_proj_attention_forward.3} parent=0 // pred_check
    _
  $region23: #{dim_proj_attention_forward.3} parent=0 // pred_check_branch
    %230 = sbr.rel (0) target = $region25
  $region24: #{dim_proj_attention_forward.3} parent=0 // pred_region
    _
  $region25: #{dim_proj_attention_forward.3} parent=0 // pred_fallthru
    _

// kernel: dim_proj_attention_forward.5
$region0: #{dim_proj_attention_forward.5}
  #allocation0 [shape = 'u32[]', space=smem, size = 0x4, offset = 0x4, fixed_abs, tag = 'smem constant byte address 0x4 - core index']
  #allocation1 [shape = 'u32[144,128]{1,0:T(1,128)}', space=vmem, size = 0x12000, scoped, tag = 'internal scratch']
  #allocation2 [shape = 'f32[16,32]{1,0:T(8,128)}', space=vmem, size = 0x2000, scoped, tag = 'scratch operand']
  %s0 = inlined_call_operand.vmem [shape: f32[16,128], index: 0, kind: input, shape index: {}]
  %s1 = inlined_call_operand.vmem [shape: f32[128,32], index: 1, kind: input, shape index: {}]
  %s2 = inlined_call_operand.vmem [shape: f32[1,32], index: 2, kind: input, shape index: {}]
  %s3 = inlined_call_operand.hbm [shape: f32[16,32], index: 3, kind: output, shape index: {}]
  %s4 = sld [smem:[#allocation0]]
  $region30: #{dim_proj_attention_forward.5} parent=0
    _
  %s6 = ssub.s32 1, %s4
  %s7 = scalar_select 0, %s6, %s4
  $region1: #{dim_proj_attention_forward.5} parent=0
    #allocation3 [shape = 'u8[8192]{0}', space=vmem, size = 0x2000, scoped, tag = 'output window, operand 0, single buffered']
    #allocation4 [shape = 's32[1]{0}', space=sflag, size = 0x4, scoped, tag = 'scoped memory for dim_proj_attention_forward.5']
    %8 = vsyncpa [#allocation4], 0
    // Predicated region
    $region2: #{dim_proj_attention_forward.5} parent=1 // pred_check
      _
    $region3: #{dim_proj_attention_forward.5} parent=1 // pred_check_branch
      %10 = sbr.rel (0) target = $region5
    $region4: #{dim_proj_attention_forward.5} parent=1 // pred_region
      _
    $region5: #{dim_proj_attention_forward.5} parent=1 // pred_fallthru
      _
    // Predicated region
    $region6: #{dim_proj_attention_forward.5} parent=1 // pred_check
      _
    $region7: #{dim_proj_attention_forward.5} parent=1 // pred_check_branch
      %12 = sbr.rel (0) target = $region9
    $region8: #{dim_proj_attention_forward.5} parent=1 // pred_region
      _
    $region9: #{dim_proj_attention_forward.5} parent=1 // pred_fallthru
      _
    // Predicated region
    $region10: #{dim_proj_attention_forward.5} parent=1 // pred_check
      _
    $region11: #{dim_proj_attention_forward.5} parent=1 // pred_check_branch
      %14 = sbr.rel (0) target = $region13
    $region12: #{dim_proj_attention_forward.5} parent=1 // pred_region
      _
    $region13: #{dim_proj_attention_forward.5} parent=1 // pred_fallthru
      _
    %p15 = scmp.eq.s32.totalorder 0, 0
    // Predicated region
    $region14: #{dim_proj_attention_forward.5} parent=1 // pred_check
      %p16 = pneg %p15
    $region15: #{dim_proj_attention_forward.5} parent=1 // pred_check_branch
      %18 = sbr.rel (%p16) target = $region17
    $region16: #{dim_proj_attention_forward.5} parent=1 // pred_region
      %vm19 = vcmask 261120
      %20 = vst.msk [vmem:[#allocation2] sm:$0xff] %vm19, 0.0
      %21 = vst.msk [vmem:[#allocation2 + $0x8] sm:$0xff] %vm19, 0.0
    $region17: #{dim_proj_attention_forward.5} parent=1 // pred_fallthru
      _
    %v22 = vld [vmem:[#allocation2] sm:$0xff]
    %v23 = vld [vmem:[#allocation2 + $0x8] sm:$0xff]
    %v24 = vld [vmem:[%s0] sm:$0xff]
    %v25 = vld [vmem:[%s0 + $0x8] sm:$0xff]
    %v26 = vld [vmem:[%s1] sm:$0xff]
    %v27 = vld [vmem:[%s1 + $0x8] sm:$0xff]
    %v28 = vld [vmem:[%s1 + $0x10] sm:$0xff]
    %v29 = vld [vmem:[%s1 + $0x18] sm:$0xff]
    %v30 = vld [vmem:[%s1 + $0x20] sm:$0xff]
    %v31 = vld [vmem:[%s1 + $0x28] sm:$0xff]
    %v32 = vld [vmem:[%s1 + $0x30] sm:$0xff]
    %v33 = vld [vmem:[%s1 + $0x38] sm:$0xff]
    %v34 = vld [vmem:[%s1 + $0x40] sm:$0xff]
    %v35 = vld [vmem:[%s1 + $0x48] sm:$0xff]
    %v36 = vld [vmem:[%s1 + $0x50] sm:$0xff]
    %v37 = vld [vmem:[%s1 + $0x58] sm:$0xff]
    %v38 = vld [vmem:[%s1 + $0x60] sm:$0xff]
    %v39 = vld [vmem:[%s1 + $0x68] sm:$0xff]
    %v40 = vld [vmem:[%s1 + $0x70] sm:$0xff]
    %v41 = vld [vmem:[%s1 + $0x78] sm:$0xff]
    %42 = vmatprep.subr.mxu0 0.0
    %43 = vmatpush1.msra.mxu0 %v26
    %44 = vmatprep.subr.mxu0 0.0
    %45 = vmatpush1.msra.mxu0 %v27
    %46 = vmatprep.subr.mxu0 0.0
    %47 = vmatpush1.msra.mxu0 %v28
    %48 = vmatprep.subr.mxu0 0.0
    %49 = vmatpush1.msra.mxu0 %v29
    %50 = vmatprep.subr.mxu0 0.0
    %51 = vmatpush1.msra.mxu0 %v30
    %52 = vmatprep.subr.mxu0 0.0
    %53 = vmatpush1.msra.mxu0 %v31
    %54 = vmatprep.subr.mxu0 0.0
    %55 = vmatpush1.msra.mxu0 %v32
    %56 = vmatprep.subr.mxu0 0.0
    %57 = vmatpush1.msra.mxu0 %v33
    %58 = vmatprep.subr.mxu0 0.0
    %59 = vmatpush1.msra.mxu0 %v34
    %60 = vmatprep.subr.mxu0 0.0
    %61 = vmatpush1.msra.mxu0 %v35
    %62 = vmatprep.subr.mxu0 0.0
    %63 = vmatpush1.msra.mxu0 %v36
    %64 = vmatprep.subr.mxu0 0.0
    %65 = vmatpush1.msra.mxu0 %v37
    %66 = vmatprep.subr.mxu0 0.0
    %67 = vmatpush1.msra.mxu0 %v38
    %68 = vmatprep.subr.mxu0 0.0
    %69 = vmatpush1.msra.mxu0 %v39
    %70 = vmatprep.subr.mxu0 0.0
    %71 = vmatpush1.msra.mxu0 %v40
    %72 = vmatprep.subr.mxu0 0.0
    %73 = vmatpush1.msra.mxu0 %v41
    %74 = vmatprep.subr.mxu0 0.0
    %75 = vmatpush1.msra.mxu0 0.0
    %76 = vmatprep.subr.mxu0 0.0
    %77 = vmatpush1.msra.mxu0 0.0
    %78 = vmatprep.subr.mxu0 0.0
    %79 = vmatpush1.msra.mxu0 0.0
    %80 = vmatprep.subr.mxu0 0.0
    %81 = vmatpush1.msra.mxu0 0.0
    %82 = vmatprep.subr.mxu0 0.0
    %83 = vmatpush1.msra.mxu0 0.0
    %84 = vmatprep.subr.mxu0 0.0
    %85 = vmatpush1.msra.mxu0 0.0
    %86 = vmatprep.subr.mxu0 0.0
    %87 = vmatpush1.msra.mxu0 0.0
    %88 = vmatprep.subr.mxu0 0.0
    %89 = vmatpush1.msra.mxu0 0.0
    %90 = vmatprep.subr.mxu0 0.0
    %91 = vmatpush1.msra.mxu0 0.0
    %92 = vmatprep.subr.mxu0 0.0
    %93 = vmatpush1.msra.mxu0 0.0
    %94 = vmatprep.subr.mxu0 0.0
    %95 = vmatpush1.msra.mxu0 0.0
    %96 = vmatprep.subr.mxu0 0.0
    %97 = vmatpush1.msra.mxu0 0.0
    %98 = vmatprep.subr.mxu0 0.0
    %99 = vmatpush1.msra.mxu0 0.0
    %100 = vmatprep.subr.mxu0 0.0
    %101 = vmatpush1.msra.mxu0 0.0
    %102 = vmatprep.subr.mxu0 0.0
    %103 = vmatpush1.msra.mxu0 0.0
    %104 = vmatprep.subr.mxu0 0.0
    %105 = vmatpush1.msra.mxu0 0.0
    %106 = vmatprep.mubr.f32.mxu0 0.0
    %107 = vmatmul.mubr.f32.gmra.mrb[0].mxu0 %v24
    %v108 = vpop.f32.mrb[0].mxu0
    %v109 = vadd.f32 0.0, %v108
    %v110 = vpop.f32.mrb[0].mxu0
    %111 = vmatprep.mubr.f32.mxu0 0.0
    %112 = vmatmul.mubr.f32.gmra.mrb[0].mxu0 %v25
    %v113 = vpop.f32.mrb[0].mxu0
    %v114 = vadd.f32 0.0, %v113
    %v115 = vpop.f32.mrb[0].mxu0
    %116 = vdwg.mxu0
    %v117 = vadd.f32 %v22, %v109
    %v118 = vadd.f32 %v23, %v114
    %vm119 = vcmask 261120
    %120 = vst.msk [vmem:[#allocation2] sm:$0xff] %vm119, %v117
    %121 = vst.msk [vmem:[#allocation2 + $0x8] sm:$0xff] %vm119, %v118
    // Predicated region
    $region18: #{dim_proj_attention_forward.5} parent=1 // pred_check
      %p122 = pneg %p15
    $region19: #{dim_proj_attention_forward.5} parent=1 // pred_check_branch
      %124 = sbr.rel (%p122) target = $region21
    $region20: #{dim_proj_attention_forward.5} parent=1 // pred_region
      %v125 = vld [vmem:[#allocation2] sm:$0xff]
      %v126 = vld [vmem:[#allocation2 + $0x8] sm:$0xff]
      %v127 = vld [vmem:[%s2] sm:$0x1]
      %v129 = vlaneseq
      %v130 = vshrl.u32 %v129, 7
      %v131 = vsub.s32 0, %v130
      %v132 = vrot.slane %v127, %v131
      %v134 = vadd.f32 %v125, %v132
      %v135 = vadd.f32 %v126, %v132
      %136 = vst.msk [vmem:[#allocation3] sm:$0xff] %vm119, %v134
      %137 = vst.msk [vmem:[#allocation3 + $0x8] sm:$0xff] %vm119, %v135
    $region21: #{dim_proj_attention_forward.5} parent=1 // pred_fallthru
      _
    // Predicated region
    $region22: #{dim_proj_attention_forward.5} parent=1 // pred_check
      _
    $region23: #{dim_proj_attention_forward.5} parent=1 // pred_check_branch
      %139 = sbr.rel (0) target = $region25
    $region24: #{dim_proj_attention_forward.5} parent=1 // pred_region
      %s141 = ssub.s32 256, 256
      %142 = vsyncadd [#allocation4], %s141
      %s143 = sshll.u32 [#allocation3], 4
      %s144 = int_to_ptr.vmem [resolvable:$true] %s143
      %149 = dma.vmem_to_hbm [thread:$0]  %s144, 256, %s3, [#allocation4], 128, 128, 8
    $region25: #{dim_proj_attention_forward.5} parent=1 // pred_fallthru
      _
    // Predicated region
    $region26: #{dim_proj_attention_forward.5} parent=1 // pred_check
      _
    $region27: #{dim_proj_attention_forward.5} parent=1 // pred_check_branch
      %151 = sbr.rel (0) target = $region29
    $region28: #{dim_proj_attention_forward.5} parent=1 // pred_region
      %152 = dma.done [#allocation4], 256
    $region29: #{dim_proj_attention_forward.5} parent=1 // pred_fallthru
      _
    %153 = vsyncpa [#allocation4], 1

// kernel: dim_proj_attention_forward.4
$region0: #{dim_proj_attention_forward.4}
  #allocation0 [shape = 'u32[]', space=smem, size = 0x4, offset = 0x4, fixed_abs, tag = 'smem constant byte address 0x4 - core index']
  #allocation1 [shape = 'u32[144,128]{1,0:T(1,128)}', space=vmem, size = 0x12000, scoped, tag = 'internal scratch']
  %s0 = inlined_call_operand.vmem [shape: f32[2,8,384], index: 0, kind: input, shape index: {}]
  %s1 = inlined_call_operand.vmem [shape: f32[2,8,128], index: 1, kind: output, shape index: {}]
  %s2 = sld [smem:[#allocation0]]
  $region37: #{dim_proj_attention_forward.4} parent=0
    _
  %s4 = ssub.s32 1, %s2
  %s5 = scalar_select 0, %s4, %s2
  loop: start=0, step=1, limit=4
  $region2: #{dim_proj_attention_forward.4} parent=0 // loop_pre_header
    _
  $region3: #{dim_proj_attention_forward.4} parent=0 // loop_header
    %s7 = sphi 0, %s11
    %p8 = scmp.ge.s32.totalorder %s7, 4
    %s17 = sphi 0, %s19
    %s20 = sphi 0, %s17
    %s21 = sphi 0, %s20
    %s37 = sphi 0, %s21
    %s43 = sphi 0, %s45
    %s46 = sphi 0, %s43
    %s47 = sphi 0, %s46
    %s63 = sphi 0, %s47
  $region4: #{dim_proj_attention_forward.4} parent=0 // loop_header_branch
    %10 = sbr.rel (%p8) target = $region8
  $region5: #{dim_proj_attention_forward.4} parent=0 // loop_body
    %s12 = ssub.s32 %s7, 1
    %s13 = ssub.s32 %s7, 2
    %s14 = sadd.s32 %s7, 1
    %s15 = ssub.s32 %s7, %s14
    %p16 = scmp.eq.s32.totalorder %s15, 0
    %s18 = sadd.s32 %s17, 1
    %s19 = scalar_select %p16, %s17, %s18
    %p22 = pneg %p16
    %p23 = scmp.eq.s32.totalorder %s7, 1
    %p24 = por %p22, %p23
    %p25 = scmp.ne.s32.totalorder %s17, %s20
    %p26 = scmp.eq.s32.totalorder %s7, 0
    %p27 = por %p25, %p26
    %p28 = scmp.ne.s32.totalorder %s17, %s20
    %p29 = scmp.eq.s32.totalorder %s12, 1
    %p30 = por %p28, %p29
    %p31 = scmp.ne.s32.totalorder %s20, %s21
    %p32 = scmp.eq.s32.totalorder %s12, 0
    %p33 = por %p31, %p32
    %p34 = scmp.ne.s32.totalorder %s20, %s21
    %p35 = scmp.eq.s32.totalorder %s13, 1
    %p36 = por %p34, %p35
    %p38 = scmp.ne.s32.totalorder %s21, %s37
    %p39 = scmp.eq.s32.totalorder %s13, 0
    %p40 = por %p38, %p39
    %s41 = ssub.s32 %s7, %s14
    %p42 = scmp.eq.s32.totalorder %s41, 0
    %s44 = sadd.s32 %s43, 1
    %s45 = scalar_select %p42, %s43, %s44
    %p48 = pneg %p42
    %p49 = scmp.eq.s32.totalorder %s7, 1
    %p50 = por %p48, %p49
    %p51 = scmp.ne.s32.totalorder %s43, %s46
    %p52 = scmp.eq.s32.totalorder %s7, 0
    %p53 = por %p51, %p52
    %p54 = scmp.ne.s32.totalorder %s43, %s46
    %p55 = scmp.eq.s32.totalorder %s12, 1
    %p56 = por %p54, %p55
    %p57 = scmp.ne.s32.totalorder %s46, %s47
    %p58 = scmp.eq.s32.totalorder %s12, 0
    %p59 = por %p57, %p58
    %p60 = scmp.ne.s32.totalorder %s46, %s47
    %p61 = scmp.eq.s32.totalorder %s13, 1
    %p62 = por %p60, %p61
    %p64 = scmp.ne.s32.totalorder %s47, %s63
    %p65 = scmp.eq.s32.totalorder %s13, 0
    %p66 = por %p64, %p65
    %p67 = scmp.le.s32.totalorder 1, %s7
    %p68 = scmp.lt.s32.totalorder %s7, 3
    %p69 = pnand %p67, %p68
    %p70 = pneg %p69
    // Predicated region
    $region9: #{dim_proj_attention_forward.4} parent=5 // pred_check
      _
    $region10: #{dim_proj_attention_forward.4} parent=5 // pred_check_branch
      %72 = sbr.rel (%p69) target = $region12
    $region11: #{dim_proj_attention_forward.4} parent=5 // pred_region
      %s73 = ssub.s32 %s7, 1
    $region12: #{dim_proj_attention_forward.4} parent=5 // pred_fallthru
      _
    %p74 = scmp.lt.s32.totalorder %s7, 2
    // Predicated region
    $region13: #{dim_proj_attention_forward.4} parent=5 // pred_check
      %p75 = pneg %p74
    $region14: #{dim_proj_attention_forward.4} parent=5 // pred_check_branch
      %77 = sbr.rel (%p75) target = $region16
    $region15: #{dim_proj_attention_forward.4} parent=5 // pred_region
      // Predicated region
      $region17: #{dim_proj_attention_forward.4} parent=15 // pred_check
        %p78 = pneg %p27
      $region18: #{dim_proj_attention_forward.4} parent=15 // pred_check_branch
        %80 = sbr.rel (%p78) target = $region20
      $region19: #{dim_proj_attention_forward.4} parent=15 // pred_region
        %p81 = scmp.lt.s32.totalorder %s7, 1
        %s82 = scalar_select %p81, %s7, 1
        %s83 = smul.addr %s82, 3
        %s84 = smul.addr %s83, 8
        %s85 = scalar_lea.vmem %s0, %s84
      $region20: #{dim_proj_attention_forward.4} parent=15 // pred_fallthru
        _
    $region16: #{dim_proj_attention_forward.4} parent=5 // pred_fallthru
      _
    %p86 = scmp.le.s32.totalorder 1, %s7
    %p87 = scmp.lt.s32.totalorder %s7, 3
    %p88 = pnand %p86, %p87
    %p89 = pneg %p88
    // Predicated region
    $region21: #{dim_proj_attention_forward.4} parent=5 // pred_check
      _
    $region22: #{dim_proj_attention_forward.4} parent=5 // pred_check_branch
      %91 = sbr.rel (%p88) target = $region24
    $region23: #{dim_proj_attention_forward.4} parent=5 // pred_region
      %s92 = ssub.s32 %s7, 1
      %p93 = scmp.lt.s32.totalorder %s12, 1
      %s94 = scalar_select %p93, %s12, 1
      %s95 = smul.addr %s94, 3
      %s96 = smul.addr %s95, 8
      %s97 = scalar_lea.vmem %s0, %s96
      %p98 = pneg %p33
      %p99 = pneg %p30
      %p100 = pneg %p59
      %p101 = pneg %p56
      %p102 = scmp.lt.s32.totalorder %s12, 1
      %s103 = scalar_select %p102, %s12, 1
      %s104 = smul.addr %s103, 8
      %s105 = scalar_lea.vmem %s1, %s104
      %p106 = scmp.lt.s32.totalorder %s12, 1
      %s107 = scalar_select %p106, %s12, 1
      %s108 = smul.addr %s107, 3
      %s109 = smul.addr %s108, 8
      %s110 = scalar_lea.vmem %s0, %s109
      %p111 = scmp.lt.s32.totalorder %s12, 1
      %s112 = scalar_select %p111, %s12, 1
      %s113 = smul.addr %s112, 8
      %s114 = scalar_lea.vmem %s1, %s113
      %v115 = vld [vmem:[%s110] sm:$0xff]
      %v116 = vld [vmem:[%s110 + $0x8] sm:$0xff]
      %v117 = vld [vmem:[%s110 + $0x10] sm:$0xff]
      %v118 = vmul.f32 %v115, 0.25
      %vm119 = vcmask 130048
      %v121 = vsel %vm119, %v118, 0
      %v124 = vsel %vm119, %v116, 0
      %126 = vmatprep.subr.mxu0 0.0
      %127 = vmatpush1.xpose.msra.mxu0 %v124
      %128 = vmatprep.subr.mxu0 0.0
      %129 = vmatpush1.xpose.msra.mxu0 0.0
      %130 = vmatprep.subr.mxu0 0.0
      %131 = vmatpush1.xpose.msra.mxu0 0.0
      %132 = vmatprep.subr.mxu0 0.0
      %133 = vmatpush1.xpose.msra.mxu0 0.0
      %134 = vmatprep.subr.mxu0 0.0
      %135 = vmatpush1.xpose.msra.mxu0 0.0
      %136 = vmatprep.subr.mxu0 0.0
      %137 = vmatpush1.xpose.msra.mxu0 0.0
      %138 = vmatprep.subr.mxu0 0.0
      %139 = vmatpush1.xpose.msra.mxu0 0.0
      %140 = vmatprep.subr.mxu0 0.0
      %141 = vmatpush1.xpose.msra.mxu0 0.0
      %142 = vmatprep.subr.mxu0 0.0
      %143 = vmatpush1.xpose.msra.mxu0 0.0
      %144 = vmatprep.subr.mxu0 0.0
      %145 = vmatpush1.xpose.msra.mxu0 0.0
      %146 = vmatprep.subr.mxu0 0.0
      %147 = vmatpush1.xpose.msra.mxu0 0.0
      %148 = vmatprep.subr.mxu0 0.0
      %149 = vmatpush1.xpose.msra.mxu0 0.0
      %150 = vmatprep.subr.mxu0 0.0
      %151 = vmatpush1.xpose.msra.mxu0 0.0
      %152 = vmatprep.subr.mxu0 0.0
      %153 = vmatpush1.xpose.msra.mxu0 0.0
      %154 = vmatprep.subr.mxu0 0.0
      %155 = vmatpush1.xpose.msra.mxu0 0.0
      %156 = vmatprep.subr.mxu0 0.0
      %157 = vmatpush1.xpose.msra.mxu0 0.0
      %158 = vmatprep.subr.mxu0 0.0
      %159 = vmatpush1.xpose.msra.mxu0 0.0
      %160 = vmatprep.subr.mxu0 0.0
      %161 = vmatpush1.xpose.msra.mxu0 0.0
      %162 = vmatprep.subr.mxu0 0.0
      %163 = vmatpush1.xpose.msra.mxu0 0.0
      %164 = vmatprep.subr.mxu0 0.0
      %165 = vmatpush1.xpose.msra.mxu0 0.0
      %166 = vmatprep.subr.mxu0 0.0
      %167 = vmatpush1.xpose.msra.mxu0 0.0
      %168 = vmatprep.subr.mxu0 0.0
      %169 = vmatpush1.xpose.msra.mxu0 0.0
      %170 = vmatprep.subr.mxu0 0.0
      %171 = vmatpush1.xpose.msra.mxu0 0.0
      %172 = vmatprep.subr.mxu0 0.0
      %173 = vmatpush1.xpose.msra.mxu0 0.0
      %174 = vmatprep.subr.mxu0 0.0
      %175 = vmatpush1.xpose.msra.mxu0 0.0
      %176 = vmatprep.subr.mxu0 0.0
      %177 = vmatpush1.xpose.msra.mxu0 0.0
      %178 = vmatprep.subr.mxu0 0.0
      %179 = vmatpush1.xpose.msra.mxu0 0.0
      %180 = vmatprep.subr.mxu0 0.0
      %181 = vmatpush1.xpose.msra.mxu0 0.0
      %182 = vmatprep.subr.mxu0 0.0
      %183 = vmatpush1.xpose.msra.mxu0 0.0
      %184 = vmatprep.subr.mxu0 0.0
      %185 = vmatpush1.xpose.msra.mxu0 0.0
      %186 = vmatprep.subr.mxu0 0.0
      %187 = vmatpush1.xpose.msra.mxu0 0.0
      %188 = vmatprep.subr.mxu0 0.0
      %189 = vmatpush1.xpose.msra.mxu0 0.0
      %190 = vmatprep.mubr.f32.mxu0 0.0
      %191 = vmatmul.mubr.f32.gmra.mrb[0].mxu0 %v121
      %v192 = vpop.f32.mrb[0].mxu0
      %v193 = vadd.f32 0.0, %v192
      %v194 = vpop.f32.mrb[0].mxu0
      %195 = vdwg.mxu0
      %vm196 = vcmask 64512
      %v197 = vsel %vm196, %v193, -inf
      %198 = vmax.xlane.f32.xlu0 %v197
      %v199 = vpop.xlane.xlu0 %198
      %v200 = vsub.f32 %v193, %v199
      %v201 = vmul.f32 %v200, 1.442695
      %v202 = vpow.pop %v201
      %v203 = vsel %vm196, %v202, 0.0
      %204 = vadd.xlane.f32.xlu0 %v203
      %v205 = vpop.xlane.xlu0 %204
      %v206 = vrcp.pop %v205
      %v207 = vmul.f32 %v202, %v206
      %v209 = vsel %vm196, %v207, 0
      %211 = vmatprep.subr.mxu0 0.0
      %212 = vmatpush1.msra.mxu0 %v117
      %213 = vmatprep.subr.mxu0 0.0
      %214 = vmatpush1.msra.mxu0 0.0
      %215 = vmatprep.subr.mxu0 0.0
      %216 = vmatpush1.msra.mxu0 0.0
      %217 = vmatprep.subr.mxu0 0.0
      %218 = vmatpush1.msra.mxu0 0.0
      %219 = vmatprep.subr.mxu0 0.0
      %220 = vmatpush1.msra.mxu0 0.0
      %221 = vmatprep.subr.mxu0 0.0
      %222 = vmatpush1.msra.mxu0 0.0
      %223 = vmatprep.subr.mxu0 0.0
      %224 = vmatpush1.msra.mxu0 0.0
      %225 = vmatprep.subr.mxu0 0.0
      %226 = vmatpush1.msra.mxu0 0.0
      %227 = vmatprep.subr.mxu0 0.0
      %228 = vmatpush1.msra.mxu0 0.0
      %229 = vmatprep.subr.mxu0 0.0
      %230 = vmatpush1.msra.mxu0 0.0
      %231 = vmatprep.subr.mxu0 0.0
      %232 = vmatpush1.msra.mxu0 0.0
      %233 = vmatprep.subr.mxu0 0.0
      %234 = vmatpush1.msra.mxu0 0.0
      %235 = vmatprep.subr.mxu0 0.0
      %236 = vmatpush1.msra.mxu0 0.0
      %237 = vmatprep.subr.mxu0 0.0
      %238 = vmatpush1.msra.mxu0 0.0
      %239 = vmatprep.subr.mxu0 0.0
      %240 = vmatpush1.msra.mxu0 0.0
      %241 = vmatprep.subr.mxu0 0.0
      %242 = vmatpush1.msra.mxu0 0.0
      %243 = vmatprep.subr.mxu0 0.0
      %244 = vmatpush1.msra.mxu0 0.0
      %245 = vmatprep.subr.mxu0 0.0
      %246 = vmatpush1.msra.mxu0 0.0
      %247 = vmatprep.subr.mxu0 0.0
      %248 = vmatpush1.msra.mxu0 0.0
      %249 = vmatprep.subr.mxu0 0.0
      %250 = vmatpush1.msra.mxu0 0.0
      %251 = vmatprep.subr.mxu0 0.0
      %252 = vmatpush1.msra.mxu0 0.0
      %253 = vmatprep.subr.mxu0 0.0
      %254 = vmatpush1.msra.mxu0 0.0
      %255 = vmatprep.subr.mxu0 0.0
      %256 = vmatpush1.msra.mxu0 0.0
      %257 = vmatprep.subr.mxu0 0.0
      %258 = vmatpush1.msra.mxu0 0.0
      %259 = vmatprep.subr.mxu0 0.0
      %260 = vmatpush1.msra.mxu0 0.0
      %261 = vmatprep.subr.mxu0 0.0
      %262 = vmatpush1.msra.mxu0 0.0
      %263 = vmatprep.subr.mxu0 0.0
      %264 = vmatpush1.msra.mxu0 0.0
      %265 = vmatprep.subr.mxu0 0.0
      %266 = vmatpush1.msra.mxu0 0.0
      %267 = vmatprep.subr.mxu0 0.0
      %268 = vmatpush1.msra.mxu0 0.0
      %269 = vmatprep.subr.mxu0 0.0
      %270 = vmatpush1.msra.mxu0 0.0
      %271 = vmatprep.subr.mxu0 0.0
      %272 = vmatpush1.msra.mxu0 0.0
      %273 = vmatprep.subr.mxu0 0.0
      %274 = vmatpush1.msra.mxu0 0.0
      %275 = vmatprep.mubr.f32.mxu0 0.0
      %276 = vmatmul.mubr.f32.gmra.mrb[0].mxu0 %v209
      %v277 = vpop.f32.mrb[0].mxu0
      %v278 = vadd.f32 0.0, %v277
      %v279 = vpop.f32.mrb[0].mxu0
      %280 = vdwg.mxu0
      %281 = vrot.lane.b32.xlu0 %v118, 112
      %v282 = vpop.permute.xlu0 %281
      %283 = vrot.lane.b32.xlu0 %v116, 112
      %v284 = vpop.permute.xlu0 %283
      %v285 = vsel %vm119, %v282, 0
      %v287 = vsel %vm119, %v284, 0
      %289 = vmatprep.subr.mxu0 0.0
      %290 = vmatpush1.xpose.msra.mxu0 %v287
      %291 = vmatprep.subr.mxu0 0.0
      %292 = vmatpush1.xpose.msra.mxu0 0.0
      %293 = vmatprep.subr.mxu0 0.0
      %294 = vmatpush1.xpose.msra.mxu0 0.0
      %295 = vmatprep.subr.mxu0 0.0
      %296 = vmatpush1.xpose.msra.mxu0 0.0
      %297 = vmatprep.subr.mxu0 0.0
      %298 = vmatpush1.xpose.msra.mxu0 0.0
      %299 = vmatprep.subr.mxu0 0.0
      %300 = vmatpush1.xpose.msra.mxu0 0.0
      %301 = vmatprep.subr.mxu0 0.0
      %302 = vmatpush1.xpose.msra.mxu0 0.0
      %303 = vmatprep.subr.mxu0 0.0
      %304 = vmatpush1.xpose.msra.mxu0 0.0
      %305 = vmatprep.subr.mxu0 0.0
      %306 = vmatpush1.xpose.msra.mxu0 0.0
      %307 = vmatprep.subr.mxu0 0.0
      %308 = vmatpush1.xpose.msra.mxu0 0.0
      %309 = vmatprep.subr.mxu0 0.0
      %310 = vmatpush1.xpose.msra.mxu0 0.0
      %311 = vmatprep.subr.mxu0 0.0
      %312 = vmatpush1.xpose.msra.mxu0 0.0
      %313 = vmatprep.subr.mxu0 0.0
      %314 = vmatpush1.xpose.msra.mxu0 0.0
      %315 = vmatprep.subr.mxu0 0.0
      %316 = vmatpush1.xpose.msra.mxu0 0.0
      %317 = vmatprep.subr.mxu0 0.0
      %318 = vmatpush1.xpose.msra.mxu0 0.0
      %319 = vmatprep.subr.mxu0 0.0
      %320 = vmatpush1.xpose.msra.mxu0 0.0
      %321 = vmatprep.subr.mxu0 0.0
      %322 = vmatpush1.xpose.msra.mxu0 0.0
      %323 = vmatprep.subr.mxu0 0.0
      %324 = vmatpush1.xpose.msra.mxu0 0.0
      %325 = vmatprep.subr.mxu0 0.0
      %326 = vmatpush1.xpose.msra.mxu0 0.0
      %327 = vmatprep.subr.mxu0 0.0
      %328 = vmatpush1.xpose.msra.mxu0 0.0
      %329 = vmatprep.subr.mxu0 0.0
      %330 = vmatpush1.xpose.msra.mxu0 0.0
      %331 = vmatprep.subr.mxu0 0.0
      %332 = vmatpush1.xpose.msra.mxu0 0.0
      %333 = vmatprep.subr.mxu0 0.0
      %334 = vmatpush1.xpose.msra.mxu0 0.0
      %335 = vmatprep.subr.mxu0 0.0
      %336 = vmatpush1.xpose.msra.mxu0 0.0
      %337 = vmatprep.subr.mxu0 0.0
      %338 = vmatpush1.xpose.msra.mxu0 0.0
      %339 = vmatprep.subr.mxu0 0.0
      %340 = vmatpush1.xpose.msra.mxu0 0.0
      %341 = vmatprep.subr.mxu0 0.0
      %342 = vmatpush1.xpose.msra.mxu0 0.0
      %343 = vmatprep.subr.mxu0 0.0
      %344 = vmatpush1.xpose.msra.mxu0 0.0
      %345 = vmatprep.subr.mxu0 0.0
      %346 = vmatpush1.xpose.msra.mxu0 0.0
      %347 = vmatprep.subr.mxu0 0.0
      %348 = vmatpush1.xpose.msra.mxu0 0.0
      %349 = vmatprep.subr.mxu0 0.0
      %350 = vmatpush1.xpose.msra.mxu0 0.0
      %351 = vmatprep.subr.mxu0 0.0
      %352 = vmatpush1.xpose.msra.mxu0 0.0
      %353 = vmatprep.mubr.f32.mxu0 0.0
      %354 = vmatmul.mubr.f32.gmra.mrb[0].mxu0 %v285
      %v355 = vpop.f32.mrb[0].mxu0
      %v356 = vadd.f32 0.0, %v355
      %v357 = vpop.f32.mrb[0].mxu0
      %358 = vdwg.mxu0
      %v359 = vsel %vm196, %v356, -inf
      %360 = vmax.xlane.f32.xlu0 %v359
      %v361 = vpop.xlane.xlu0 %360
      %v362 = vsub.f32 %v356, %v361
      %v363 = vmul.f32 %v362, 1.442695
      %v364 = vpow.pop %v363
      %v365 = vsel %vm196, %v364, 0.0
      %366 = vadd.xlane.f32.xlu0 %v365
      %v367 = vpop.xlane.xlu0 %366
      %v368 = vrcp.pop %v367
      %v369 = vmul.f32 %v364, %v368
      %371 = vrot.lane.b32.xlu0 %v117, 112
      %v372 = vpop.permute.xlu0 %371
      %v375 = vsel %vm196, %v369, 0
      %377 = vmatprep.subr.mxu0 0.0
      %378 = vmatpush1.msra.mxu0 %v372
      %379 = vmatprep.subr.mxu0 0.0
      %380 = vmatpush1.msra.mxu0 0.0
      %381 = vmatprep.subr.mxu0 0.0
      %382 = vmatpush1.msra.mxu0 0.0
      %383 = vmatprep.subr.mxu0 0.0
      %384 = vmatpush1.msra.mxu0 0.0
      %385 = vmatprep.subr.mxu0 0.0
      %386 = vmatpush1.msra.mxu0 0.0
      %387 = vmatprep.subr.mxu0 0.0
      %388 = vmatpush1.msra.mxu0 0.0
      %389 = vmatprep.subr.mxu0 0.0
      %390 = vmatpush1.msra.mxu0 0.0
      %391 = vmatprep.subr.mxu0 0.0
      %392 = vmatpush1.msra.mxu0 0.0
      %393 = vmatprep.subr.mxu0 0.0
      %394 = vmatpush1.msra.mxu0 0.0
      %395 = vmatprep.subr.mxu0 0.0
      %396 = vmatpush1.msra.mxu0 0.0
      %397 = vmatprep.subr.mxu0 0.0
      %398 = vmatpush1.msra.mxu0 0.0
      %399 = vmatprep.subr.mxu0 0.0
      %400 = vmatpush1.msra.mxu0 0.0
      %401 = vmatprep.subr.mxu0 0.0
      %402 = vmatpush1.msra.mxu0 0.0
      %403 = vmatprep.subr.mxu0 0.0
      %404 = vmatpush1.msra.mxu0 0.0
      %405 = vmatprep.subr.mxu0 0.0
      %406 = vmatpush1.msra.mxu0 0.0
      %407 = vmatprep.subr.mxu0 0.0
      %408 = vmatpush1.msra.mxu0 0.0
      %409 = vmatprep.subr.mxu0 0.0
      %410 = vmatpush1.msra.mxu0 0.0
      %411 = vmatprep.subr.mxu0 0.0
      %412 = vmatpush1.msra.mxu0 0.0
      %413 = vmatprep.subr.mxu0 0.0
      %414 = vmatpush1.msra.mxu0 0.0
      %415 = vmatprep.subr.mxu0 0.0
      %416 = vmatpush1.msra.mxu0 0.0
      %417 = vmatprep.subr.mxu0 0.0
      %418 = vmatpush1.msra.mxu0 0.0
      %419 = vmatprep.subr.mxu0 0.0
      %420 = vmatpush1.msra.mxu0 0.0
      %421 = vmatprep.subr.mxu0 0.0
      %422 = vmatpush1.msra.mxu0 0.0
      %423 = vmatprep.subr.mxu0 0.0
      %424 = vmatpush1.msra.mxu0 0.0
      %425 = vmatprep.subr.mxu0 0.0
      %426 = vmatpush1.msra.mxu0 0.0
      %427 = vmatprep.subr.mxu0 0.0
      %428 = vmatpush1.msra.mxu0 0.0
      %429 = vmatprep.subr.mxu0 0.0
      %430 = vmatpush1.msra.mxu0 0.0
      %431 = vmatprep.subr.mxu0 0.0
      %432 = vmatpush1.msra.mxu0 0.0
      %433 = vmatprep.subr.mxu0 0.0
      %434 = vmatpush1.msra.mxu0 0.0
      %435 = vmatprep.subr.mxu0 0.0
      %436 = vmatpush1.msra.mxu0 0.0
      %437 = vmatprep.subr.mxu0 0.0
      %438 = vmatpush1.msra.mxu0 0.0
      %439 = vmatprep.subr.mxu0 0.0
      %440 = vmatpush1.msra.mxu0 0.0
      %441 = vmatprep.mubr.f32.mxu0 0.0
      %442 = vmatmul.mubr.f32.gmra.mrb[0].mxu0 %v375
      %v443 = vpop.f32.mrb[0].mxu0
      %v444 = vadd.f32 0.0, %v443
      %v445 = vpop.f32.mrb[0].mxu0
      %446 = vdwg.mxu0
      %447 = vrot.lane.b32.xlu0 %v118, 96
      %v448 = vpop.permute.xlu0 %447
      %449 = vrot.lane.b32.xlu0 %v116, 96
      %v450 = vpop.permute.xlu0 %449
      %v451 = vsel %vm119, %v448, 0
      %v453 = vsel %vm119, %v450, 0
      %455 = vmatprep.subr.mxu0 0.0
      %456 = vmatpush1.xpose.msra.mxu0 %v453
      %457 = vmatprep.subr.mxu0 0.0
      %458 = vmatpush1.xpose.msra.mxu0 0.0
      %459 = vmatprep.subr.mxu0 0.0
      %460 = vmatpush1.xpose.msra.mxu0 0.0
      %461 = vmatprep.subr.mxu0 0.0
      %462 = vmatpush1.xpose.msra.mxu0 0.0
      %463 = vmatprep.subr.mxu0 0.0
      %464 = vmatpush1.xpose.msra.mxu0 0.0
      %465 = vmatprep.subr.mxu0 0.0
      %466 = vmatpush1.xpose.msra.mxu0 0.0
      %467 = vmatprep.subr.mxu0 0.0
      %468 = vmatpush1.xpose.msra.mxu0 0.0
      %469 = vmatprep.subr.mxu0 0.0
      %470 = vmatpush1.xpose.msra.mxu0 0.0
      %471 = vmatprep.subr.mxu0 0.0
      %472 = vmatpush1.xpose.msra.mxu0 0.0
      %473 = vmatprep.subr.mxu0 0.0
      %474 = vmatpush1.xpose.msra.mxu0 0.0
      %475 = vmatprep.subr.mxu0 0.0
      %476 = vmatpush1.xpose.msra.mxu0 0.0
      %477 = vmatprep.subr.mxu0 0.0
      %478 = vmatpush1.xpose.msra.mxu0 0.0
      %479 = vmatprep.subr.mxu0 0.0
      %480 = vmatpush1.xpose.msra.mxu0 0.0
      %481 = vmatprep.subr.mxu0 0.0
      %482 = vmatpush1.xpose.msra.mxu0 0.0
      %483 = vmatprep.subr.mxu0 0.0
      %484 = vmatpush1.xpose.msra.mxu0 0.0
      %485 = vmatprep.subr.mxu0 0.0
      %486 = vmatpush1.xpose.msra.mxu0 0.0
      %487 = vmatprep.subr.mxu0 0.0
      %488 = vmatpush1.xpose.msra.mxu0 0.0
      %489 = vmatprep.subr.mxu0 0.0
      %490 = vmatpush1.xpose.msra.mxu0 0.0
      %491 = vmatprep.subr.mxu0 0.0
      %492 = vmatpush1.xpose.msra.mxu0 0.0
      %493 = vmatprep.subr.mxu0 0.0
      %494 = vmatpush1.xpose.msra.mxu0 0.0
      %495 = vmatprep.subr.mxu0 0.0
      %496 = vmatpush1.xpose.msra.mxu0 0.0
      %497 = vmatprep.subr.mxu0 0.0
      %498 = vmatpush1.xpose.msra.mxu0 0.0
      %499 = vmatprep.subr.mxu0 0.0
      %500 = vmatpush1.xpose.msra.mxu0 0.0
      %501 = vmatprep.subr.mxu0 0.0
      %502 = vmatpush1.xpose.msra.mxu0 0.0
      %503 = vmatprep.subr.mxu0 0.0
      %504 = vmatpush1.xpose.msra.mxu0 0.0
      %505 = vmatprep.subr.mxu0 0.0
      %506 = vmatpush1.xpose.msra.mxu0 0.0
      %507 = vmatprep.subr.mxu0 0.0
      %508 = vmatpush1.xpose.msra.mxu0 0.0
      %509 = vmatprep.subr.mxu0 0.0
      %510 = vmatpush1.xpose.msra.mxu0 0.0
      %511 = vmatprep.subr.mxu0 0.0
      %512 = vmatpush1.xpose.msra.mxu0 0.0
      %513 = vmatprep.subr.mxu0 0.0
      %514 = vmatpush1.xpose.msra.mxu0 0.0
      %515 = vmatprep.subr.mxu0 0.0
      %516 = vmatpush1.xpose.msra.mxu0 0.0
      %517 = vmatprep.subr.mxu0 0.0
      %518 = vmatpush1.xpose.msra.mxu0 0.0
      %519 = vmatprep.mubr.f32.mxu0 0.0
      %520 = vmatmul.mubr.f32.gmra.mrb[0].mxu0 %v451
      %v521 = vpop.f32.mrb[0].mxu0
      %v522 = vadd.f32 0.0, %v521
      %v523 = vpop.f32.mrb[0].mxu0
      %524 = vdwg.mxu0
      %v525 = vsel %vm196, %v522, -inf
      %526 = vmax.xlane.f32.xlu0 %v525
      %v527 = vpop.xlane.xlu0 %526
      %v528 = vsub.f32 %v522, %v527
      %v529 = vmul.f32 %v528, 1.442695
      %v530 = vpow.pop %v529
      %v531 = vsel %vm196, %v530, 0.0
      %532 = vadd.xlane.f32.xlu0 %v531
      %v533 = vpop.xlane.xlu0 %532
      %v534 = vrcp.pop %v533
      %v535 = vmul.f32 %v530, %v534
      %536 = vrot.lane.b32.xlu0 %v117, 96
      %v537 = vpop.permute.xlu0 %536
      %v540 = vsel %vm196, %v535, 0
      %542 = vmatprep.subr.mxu0 0.0
      %543 = vmatpush1.msra.mxu0 %v537
      %544 = vmatprep.subr.mxu0 0.0
      %545 = vmatpush1.msra.mxu0 0.0
      %546 = vmatprep.subr.mxu0 0.0
      %547 = vmatpush1.msra.mxu0 0.0
      %548 = vmatprep.subr.mxu0 0.0
      %549 = vmatpush1.msra.mxu0 0.0
      %550 = vmatprep.subr.mxu0 0.0
      %551 = vmatpush1.msra.mxu0 0.0
      %552 = vmatprep.subr.mxu0 0.0
      %553 = vmatpush1.msra.mxu0 0.0
      %554 = vmatprep.subr.mxu0 0.0
      %555 = vmatpush1.msra.mxu0 0.0
      %556 = vmatprep.subr.mxu0 0.0
      %557 = vmatpush1.msra.mxu0 0.0
      %558 = vmatprep.subr.mxu0 0.0
      %559 = vmatpush1.msra.mxu0 0.0
      %560 = vmatprep.subr.mxu0 0.0
      %561 = vmatpush1.msra.mxu0 0.0
      %562 = vmatprep.subr.mxu0 0.0
      %563 = vmatpush1.msra.mxu0 0.0
      %564 = vmatprep.subr.mxu0 0.0
      %565 = vmatpush1.msra.mxu0 0.0
      %566 = vmatprep.subr.mxu0 0.0
      %567 = vmatpush1.msra.mxu0 0.0
      %568 = vmatprep.subr.mxu0 0.0
      %569 = vmatpush1.msra.mxu0 0.0
      %570 = vmatprep.subr.mxu0 0.0
      %571 = vmatpush1.msra.mxu0 0.0
      %572 = vmatprep.subr.mxu0 0.0
      %573 = vmatpush1.msra.mxu0 0.0
      %574 = vmatprep.subr.mxu0 0.0
      %575 = vmatpush1.msra.mxu0 0.0
      %576 = vmatprep.subr.mxu0 0.0
      %577 = vmatpush1.msra.mxu0 0.0
      %578 = vmatprep.subr.mxu0 0.0
      %579 = vmatpush1.msra.mxu0 0.0
      %580 = vmatprep.subr.mxu0 0.0
      %581 = vmatpush1.msra.mxu0 0.0
      %582 = vmatprep.subr.mxu0 0.0
      %583 = vmatpush1.msra.mxu0 0.0
      %584 = vmatprep.subr.mxu0 0.0
      %585 = vmatpush1.msra.mxu0 0.0
      %586 = vmatprep.subr.mxu0 0.0
      %587 = vmatpush1.msra.mxu0 0.0
      %588 = vmatprep.subr.mxu0 0.0
      %589 = vmatpush1.msra.mxu0 0.0
      %590 = vmatprep.subr.mxu0 0.0
      %591 = vmatpush1.msra.mxu0 0.0
      %592 = vmatprep.subr.mxu0 0.0
      %593 = vmatpush1.msra.mxu0 0.0
      %594 = vmatprep.subr.mxu0 0.0
      %595 = vmatpush1.msra.mxu0 0.0
      %596 = vmatprep.subr.mxu0 0.0
      %597 = vmatpush1.msra.mxu0 0.0
      %598 = vmatprep.subr.mxu0 0.0
      %599 = vmatpush1.msra.mxu0 0.0
      %600 = vmatprep.subr.mxu0 0.0
      %601 = vmatpush1.msra.mxu0 0.0
      %602 = vmatprep.subr.mxu0 0.0
      %603 = vmatpush1.msra.mxu0 0.0
      %604 = vmatprep.subr.mxu0 0.0
      %605 = vmatpush1.msra.mxu0 0.0
      %606 = vmatprep.mubr.f32.mxu0 0.0
      %607 = vmatmul.mubr.f32.gmra.mrb[0].mxu0 %v540
      %v608 = vpop.f32.mrb[0].mxu0
      %v609 = vadd.f32 0.0, %v608
      %v610 = vpop.f32.mrb[0].mxu0
      %611 = vdwg.mxu0
      %612 = vrot.lane.b32.xlu0 %v118, 80
      %v613 = vpop.permute.xlu0 %612
      %614 = vrot.lane.b32.xlu0 %v116, 80
      %v615 = vpop.permute.xlu0 %614
      %v616 = vsel %vm119, %v613, 0
      %v618 = vsel %vm119, %v615, 0
      %620 = vmatprep.subr.mxu0 0.0
      %621 = vmatpush1.xpose.msra.mxu0 %v618
      %622 = vmatprep.subr.mxu0 0.0
      %623 = vmatpush1.xpose.msra.mxu0 0.0
      %624 = vmatprep.subr.mxu0 0.0
      %625 = vmatpush1.xpose.msra.mxu0 0.0
      %626 = vmatprep.subr.mxu0 0.0
      %627 = vmatpush1.xpose.msra.mxu0 0.0
      %628 = vmatprep.subr.mxu0 0.0
      %629 = vmatpush1.xpose.msra.mxu0 0.0
      %630 = vmatprep.subr.mxu0 0.0
      %631 = vmatpush1.xpose.msra.mxu0 0.0
      %632 = vmatprep.subr.mxu0 0.0
      %633 = vmatpush1.xpose.msra.mxu0 0.0
      %634 = vmatprep.subr.mxu0 0.0
      %635 = vmatpush1.xpose.msra.mxu0 0.0
      %636 = vmatprep.subr.mxu0 0.0
      %637 = vmatpush1.xpose.msra.mxu0 0.0
      %638 = vmatprep.subr.mxu0 0.0
      %639 = vmatpush1.xpose.msra.mxu0 0.0
      %640 = vmatprep.subr.mxu0 0.0
      %641 = vmatpush1.xpose.msra.mxu0 0.0
      %642 = vmatprep.subr.mxu0 0.0
      %643 = vmatpush1.xpose.msra.mxu0 0.0
      %644 = vmatprep.subr.mxu0 0.0
      %645 = vmatpush1.xpose.msra.mxu0 0.0
      %646 = vmatprep.subr.mxu0 0.0
      %647 = vmatpush1.xpose.msra.mxu0 0.0
      %648 = vmatprep.subr.mxu0 0.0
      %649 = vmatpush1.xpose.msra.mxu0 0.0
      %650 = vmatprep.subr.mxu0 0.0
      %651 = vmatpush1.xpose.msra.mxu0 0.0
      %652 = vmatprep.subr.mxu0 0.0
      %653 = vmatpush1.xpose.msra.mxu0 0.0
      %654 = vmatprep.subr.mxu0 0.0
      %655 = vmatpush1.xpose.msra.mxu0 0.0
      %656 = vmatprep.subr.mxu0 0.0
      %657 = vmatpush1.xpose.msra.mxu0 0.0
      %658 = vmatprep.subr.mxu0 0.0
      %659 = vmatpush1.xpose.msra.mxu0 0.0
      %660 = vmatprep.subr.mxu0 0.0
      %661 = vmatpush1.xpose.msra.mxu0 0.0
      %662 = vmatprep.subr.mxu0 0.0
      %663 = vmatpush1.xpose.msra.mxu0 0.0
      %664 = vmatprep.subr.mxu0 0.0
      %665 = vmatpush1.xpose.msra.mxu0 0.0
      %666 = vmatprep.subr.mxu0 0.0
      %667 = vmatpush1.xpose.msra.mxu0 0.0
      %668 = vmatprep.subr.mxu0 0.0
      %669 = vmatpush1.xpose.msra.mxu0 0.0
      %670 = vmatprep.subr.mxu0 0.0
      %671 = vmatpush1.xpose.msra.mxu0 0.0
      %672 = vmatprep.subr.mxu0 0.0
      %673 = vmatpush1.xpose.msra.mxu0 0.0
      %674 = vmatprep.subr.mxu0 0.0
      %675 = vmatpush1.xpose.msra.mxu0 0.0
      %676 = vmatprep.subr.mxu0 0.0
      %677 = vmatpush1.xpose.msra.mxu0 0.0
      %678 = vmatprep.subr.mxu0 0.0
      %679 = vmatpush1.xpose.msra.mxu0 0.0
      %680 = vmatprep.subr.mxu0 0.0
      %681 = vmatpush1.xpose.msra.mxu0 0.0
      %682 = vmatprep.subr.mxu0 0.0
      %683 = vmatpush1.xpose.msra.mxu0 0.0
      %684 = vmatprep.mubr.f32.mxu0 0.0
      %685 = vmatmul.mubr.f32.gmra.mrb[0].mxu0 %v616
      %v686 = vpop.f32.mrb[0].mxu0
      %v687 = vadd.f32 0.0, %v686
      %v688 = vpop.f32.mrb[0].mxu0
      %689 = vdwg.mxu0
      %v690 = vsel %vm196, %v687, -inf
      %691 = vmax.xlane.f32.xlu0 %v690
      %v692 = vpop.xlane.xlu0 %691
      %v693 = vsub.f32 %v687, %v692
      %v694 = vmul.f32 %v693, 1.442695
      %v695 = vpow.pop %v694
      %v696 = vsel %vm196, %v695, 0.0
      %697 = vadd.xlane.f32.xlu0 %v696
      %v698 = vpop.xlane.xlu0 %697
      %v699 = vrcp.pop %v698
      %v700 = vmul.f32 %v695, %v699
      %701 = vrot.lane.b32.xlu0 %v117, 80
      %v702 = vpop.permute.xlu0 %701
      %v705 = vsel %vm196, %v700, 0
      %707 = vmatprep.subr.mxu0 0.0
      %708 = vmatpush1.msra.mxu0 %v702
      %709 = vmatprep.subr.mxu0 0.0
      %710 = vmatpush1.msra.mxu0 0.0
      %711 = vmatprep.subr.mxu0 0.0
      %712 = vmatpush1.msra.mxu0 0.0
      %713 = vmatprep.subr.mxu0 0.0
      %714 = vmatpush1.msra.mxu0 0.0
      %715 = vmatprep.subr.mxu0 0.0
      %716 = vmatpush1.msra.mxu0 0.0
      %717 = vmatprep.subr.mxu0 0.0
      %718 = vmatpush1.msra.mxu0 0.0
      %719 = vmatprep.subr.mxu0 0.0
      %720 = vmatpush1.msra.mxu0 0.0
      %721 = vmatprep.subr.mxu0 0.0
      %722 = vmatpush1.msra.mxu0 0.0
      %723 = vmatprep.subr.mxu0 0.0
      %724 = vmatpush1.msra.mxu0 0.0
      %725 = vmatprep.subr.mxu0 0.0
      %726 = vmatpush1.msra.mxu0 0.0
      %727 = vmatprep.subr.mxu0 0.0
      %728 = vmatpush1.msra.mxu0 0.0
      %729 = vmatprep.subr.mxu0 0.0
      %730 = vmatpush1.msra.mxu0 0.0
      %731 = vmatprep.subr.mxu0 0.0
      %732 = vmatpush1.msra.mxu0 0.0
      %733 = vmatprep.subr.mxu0 0.0
      %734 = vmatpush1.msra.mxu0 0.0
      %735 = vmatprep.subr.mxu0 0.0
      %736 = vmatpush1.msra.mxu0 0.0
      %737 = vmatprep.subr.mxu0 0.0
      %738 = vmatpush1.msra.mxu0 0.0
      %739 = vmatprep.subr.mxu0 0.0
      %740 = vmatpush1.msra.mxu0 0.0
      %741 = vmatprep.subr.mxu0 0.0
      %742 = vmatpush1.msra.mxu0 0.0
      %743 = vmatprep.subr.mxu0 0.0
      %744 = vmatpush1.msra.mxu0 0.0
      %745 = vmatprep.subr.mxu0 0.0
      %746 = vmatpush1.msra.mxu0 0.0
      %747 = vmatprep.subr.mxu0 0.0
      %748 = vmatpush1.msra.mxu0 0.0
      %749 = vmatprep.subr.mxu0 0.0
      %750 = vmatpush1.msra.mxu0 0.0
      %751 = vmatprep.subr.mxu0 0.0
      %752 = vmatpush1.msra.mxu0 0.0
      %753 = vmatprep.subr.mxu0 0.0
      %754 = vmatpush1.msra.mxu0 0.0
      %755 = vmatprep.subr.mxu0 0.0
      %756 = vmatpush1.msra.mxu0 0.0
      %757 = vmatprep.subr.mxu0 0.0
      %758 = vmatpush1.msra.mxu0 0.0
      %759 = vmatprep.subr.mxu0 0.0
      %760 = vmatpush1.msra.mxu0 0.0
      %761 = vmatprep.subr.mxu0 0.0
      %762 = vmatpush1.msra.mxu0 0.0
      %763 = vmatprep.subr.mxu0 0.0
      %764 = vmatpush1.msra.mxu0 0.0
      %765 = vmatprep.subr.mxu0 0.0
      %766 = vmatpush1.msra.mxu0 0.0
      %767 = vmatprep.subr.mxu0 0.0
      %768 = vmatpush1.msra.mxu0 0.0
      %769 = vmatprep.subr.mxu0 0.0
      %770 = vmatpush1.msra.mxu0 0.0
      %771 = vmatprep.mubr.f32.mxu0 0.0
      %772 = vmatmul.mubr.f32.gmra.mrb[0].mxu0 %v705
      %v773 = vpop.f32.mrb[0].mxu0
      %v774 = vadd.f32 0.0, %v773
      %v775 = vpop.f32.mrb[0].mxu0
      %776 = vdwg.mxu0
      %777 = vrot.lane.b32.xlu0 %v118, 64
      %v778 = vpop.permute.xlu0 %777
      %779 = vrot.lane.b32.xlu0 %v116, 64
      %v780 = vpop.permute.xlu0 %779
      %v781 = vsel %vm119, %v778, 0
      %v783 = vsel %vm119, %v780, 0
      %785 = vmatprep.subr.mxu0 0.0
      %786 = vmatpush1.xpose.msra.mxu0 %v783
      %787 = vmatprep.subr.mxu0 0.0
      %788 = vmatpush1.xpose.msra.mxu0 0.0
      %789 = vmatprep.subr.mxu0 0.0
      %790 = vmatpush1.xpose.msra.mxu0 0.0
      %791 = vmatprep.subr.mxu0 0.0
      %792 = vmatpush1.xpose.msra.mxu0 0.0
      %793 = vmatprep.subr.mxu0 0.0
      %794 = vmatpush1.xpose.msra.mxu0 0.0
      %795 = vmatprep.subr.mxu0 0.0
      %796 = vmatpush1.xpose.msra.mxu0 0.0
      %797 = vmatprep.subr.mxu0 0.0
      %798 = vmatpush1.xpose.msra.mxu0 0.0
      %799 = vmatprep.subr.mxu0 0.0
      %800 = vmatpush1.xpose.msra.mxu0 0.0
      %801 = vmatprep.subr.mxu0 0.0
      %802 = vmatpush1.xpose.msra.mxu0 0.0
      %803 = vmatprep.subr.mxu0 0.0
      %804 = vmatpush1.xpose.msra.mxu0 0.0
      %805 = vmatprep.subr.mxu0 0.0
      %806 = vmatpush1.xpose.msra.mxu0 0.0
      %807 = vmatprep.subr.mxu0 0.0
      %808 = vmatpush1.xpose.msra.mxu0 0.0
      %809 = vmatprep.subr.mxu0 0.0
      %810 = vmatpush1.xpose.msra.mxu0 0.0
      %811 = vmatprep.subr.mxu0 0.0
      %812 = vmatpush1.xpose.msra.mxu0 0.0
      %813 = vmatprep.subr.mxu0 0.0
      %814 = vmatpush1.xpose.msra.mxu0 0.0
      %815 = vmatprep.subr.mxu0 0.0
      %816 = vmatpush1.xpose.msra.mxu0 0.0
      %817 = vmatprep.subr.mxu0 0.0
      %818 = vmatpush1.xpose.msra.mxu0 0.0
      %819 = vmatprep.subr.mxu0 0.0
      %820 = vmatpush1.xpose.msra.mxu0 0.0
      %821 = vmatprep.subr.mxu0 0.0
      %822 = vmatpush1.xpose.msra.mxu0 0.0
      %823 = vmatprep.subr.mxu0 0.0
      %824 = vmatpush1.xpose.msra.mxu0 0.0
      %825 = vmatprep.subr.mxu0 0.0
      %826 = vmatpush1.xpose.msra.mxu0 0.0
      %827 = vmatprep.subr.mxu0 0.0
      %828 = vmatpush1.xpose.msra.mxu0 0.0
      %829 = vmatprep.subr.mxu0 0.0
      %830 = vmatpush1.xpose.msra.mxu0 0.0
      %831 = vmatprep.subr.mxu0 0.0
      %832 = vmatpush1.xpose.msra.mxu0 0.0
      %833 = vmatprep.subr.mxu0 0.0
      %834 = vmatpush1.xpose.msra.mxu0 0.0
      %835 = vmatprep.subr.mxu0 0.0
      %836 = vmatpush1.xpose.msra.mxu0 0.0
      %837 = vmatprep.subr.mxu0 0.0
      %838 = vmatpush1.xpose.msra.mxu0 0.0
      %839 = vmatprep.subr.mxu0 0.0
      %840 = vmatpush1.xpose.msra.mxu0 0.0
      %841 = vmatprep.subr.mxu0 0.0
      %842 = vmatpush1.xpose.msra.mxu0 0.0
      %843 = vmatprep.subr.mxu0 0.0
      %844 = vmatpush1.xpose.msra.mxu0 0.0
      %845 = vmatprep.subr.mxu0 0.0
      %846 = vmatpush1.xpose.msra.mxu0 0.0
      %847 = vmatprep.subr.mxu0 0.0
      %848 = vmatpush1.xpose.msra.mxu0 0.0
      %849 = vmatprep.mubr.f32.mxu0 0.0
      %850 = vmatmul.mubr.f32.gmra.mrb[0].mxu0 %v781
      %v851 = vpop.f32.mrb[0].mxu0
      %v852 = vadd.f32 0.0, %v851
      %v853 = vpop.f32.mrb[0].mxu0
      %854 = vdwg.mxu0
      %v855 = vsel %vm196, %v852, -inf
      %856 = vmax.xlane.f32.xlu0 %v855
      %v857 = vpop.xlane.xlu0 %856
      %v858 = vsub.f32 %v852, %v857
      %v859 = vmul.f32 %v858, 1.442695
      %v860 = vpow.pop %v859
      %v861 = vsel %vm196, %v860, 0.0
      %862 = vadd.xlane.f32.xlu0 %v861
      %v863 = vpop.xlane.xlu0 %862
      %v864 = vrcp.pop %v863
      %v865 = vmul.f32 %v860, %v864
      %866 = vrot.lane.b32.xlu0 %v117, 64
      %v867 = vpop.permute.xlu0 %866
      %v870 = vsel %vm196, %v865, 0
      %872 = vmatprep.subr.mxu0 0.0
      %873 = vmatpush1.msra.mxu0 %v867
      %874 = vmatprep.subr.mxu0 0.0
      %875 = vmatpush1.msra.mxu0 0.0
      %876 = vmatprep.subr.mxu0 0.0
      %877 = vmatpush1.msra.mxu0 0.0
      %878 = vmatprep.subr.mxu0 0.0
      %879 = vmatpush1.msra.mxu0 0.0
      %880 = vmatprep.subr.mxu0 0.0
      %881 = vmatpush1.msra.mxu0 0.0
      %882 = vmatprep.subr.mxu0 0.0
      %883 = vmatpush1.msra.mxu0 0.0
      %884 = vmatprep.subr.mxu0 0.0
      %885 = vmatpush1.msra.mxu0 0.0
      %886 = vmatprep.subr.mxu0 0.0
      %887 = vmatpush1.msra.mxu0 0.0
      %888 = vmatprep.subr.mxu0 0.0
      %889 = vmatpush1.msra.mxu0 0.0
      %890 = vmatprep.subr.mxu0 0.0
      %891 = vmatpush1.msra.mxu0 0.0
      %892 = vmatprep.subr.mxu0 0.0
      %893 = vmatpush1.msra.mxu0 0.0
      %894 = vmatprep.subr.mxu0 0.0
      %895 = vmatpush1.msra.mxu0 0.0
      %896 = vmatprep.subr.mxu0 0.0
      %897 = vmatpush1.msra.mxu0 0.0
      %898 = vmatprep.subr.mxu0 0.0
      %899 = vmatpush1.msra.mxu0 0.0
      %900 = vmatprep.subr.mxu0 0.0
      %901 = vmatpush1.msra.mxu0 0.0
      %902 = vmatprep.subr.mxu0 0.0
      %903 = vmatpush1.msra.mxu0 0.0
      %904 = vmatprep.subr.mxu0 0.0
      %905 = vmatpush1.msra.mxu0 0.0
      %906 = vmatprep.subr.mxu0 0.0
      %907 = vmatpush1.msra.mxu0 0.0
      %908 = vmatprep.subr.mxu0 0.0
      %909 = vmatpush1.msra.mxu0 0.0
      %910 = vmatprep.subr.mxu0 0.0
      %911 = vmatpush1.msra.mxu0 0.0
      %912 = vmatprep.subr.mxu0 0.0
      %913 = vmatpush1.msra.mxu0 0.0
      %914 = vmatprep.subr.mxu0 0.0
      %915 = vmatpush1.msra.mxu0 0.0
      %916 = vmatprep.subr.mxu0 0.0
      %917 = vmatpush1.msra.mxu0 0.0
      %918 = vmatprep.subr.mxu0 0.0
      %919 = vmatpush1.msra.mxu0 0.0
      %920 = vmatprep.subr.mxu0 0.0
      %921 = vmatpush1.msra.mxu0 0.0
      %922 = vmatprep.subr.mxu0 0.0
      %923 = vmatpush1.msra.mxu0 0.0
      %924 = vmatprep.subr.mxu0 0.0
      %925 = vmatpush1.msra.mxu0 0.0
      %926 = vmatprep.subr.mxu0 0.0
      %927 = vmatpush1.msra.mxu0 0.0
      %928 = vmatprep.subr.mxu0 0.0
      %929 = vmatpush1.msra.mxu0 0.0
      %930 = vmatprep.subr.mxu0 0.0
      %931 = vmatpush1.msra.mxu0 0.0
      %932 = vmatprep.subr.mxu0 0.0
      %933 = vmatpush1.msra.mxu0 0.0
      %934 = vmatprep.subr.mxu0 0.0
      %935 = vmatpush1.msra.mxu0 0.0
      %936 = vmatprep.mubr.f32.mxu0 0.0
      %937 = vmatmul.mubr.f32.gmra.mrb[0].mxu0 %v870
      %v938 = vpop.f32.mrb[0].mxu0
      %v939 = vadd.f32 0.0, %v938
      %v940 = vpop.f32.mrb[0].mxu0
      %941 = vdwg.mxu0
      %942 = vrot.lane.b32.xlu0 %v118, 48
      %v943 = vpop.permute.xlu0 %942
      %944 = vrot.lane.b32.xlu0 %v116, 48
      %v945 = vpop.permute.xlu0 %944
      %v946 = vsel %vm119, %v943, 0
      %v948 = vsel %vm119, %v945, 0
      %950 = vmatprep.subr.mxu0 0.0
      %951 = vmatpush1.xpose.msra.mxu0 %v948
      %952 = vmatprep.subr.mxu0 0.0
      %953 = vmatpush1.xpose.msra.mxu0 0.0
      %954 = vmatprep.subr.mxu0 0.0
      %955 = vmatpush1.xpose.msra.mxu0 0.0
      %956 = vmatprep.subr.mxu0 0.0
      %957 = vmatpush1.xpose.msra.mxu0 0.0
      %958 = vmatprep.subr.mxu0 0.0
      %959 = vmatpush1.xpose.msra.mxu0 0.0
      %960 = vmatprep.subr.mxu0 0.0
      %961 = vmatpush1.xpose.msra.mxu0 0.0
      %962 = vmatprep.subr.mxu0 0.0
      %963 = vmatpush1.xpose.msra.mxu0 0.0
      %964 = vmatprep.subr.mxu0 0.0
      %965 = vmatpush1.xpose.msra.mxu0 0.0
      %966 = vmatprep.subr.mxu0 0.0
      %967 = vmatpush1.xpose.msra.mxu0 0.0
      %968 = vmatprep.subr.mxu0 0.0
      %969 = vmatpush1.xpose.msra.mxu0 0.0
      %970 = vmatprep.subr.mxu0 0.0
      %971 = vmatpush1.xpose.msra.mxu0 0.0
      %972 = vmatprep.subr.mxu0 0.0
      %973 = vmatpush1.xpose.msra.mxu0 0.0
      %974 = vmatprep.subr.mxu0 0.0
      %975 = vmatpush1.xpose.msra.mxu0 0.0
      %976 = vmatprep.subr.mxu0 0.0
      %977 = vmatpush1.xpose.msra.mxu0 0.0
      %978 = vmatprep.subr.mxu0 0.0
      %979 = vmatpush1.xpose.msra.mxu0 0.0
      %980 = vmatprep.subr.mxu0 0.0
      %981 = vmatpush1.xpose.msra.mxu0 0.0
      %982 = vmatprep.subr.mxu0 0.0
      %983 = vmatpush1.xpose.msra.mxu0 0.0
      %984 = vmatprep.subr.mxu0 0.0
      %985 = vmatpush1.xpose.msra.mxu0 0.0
      %986 = vmatprep.subr.mxu0 0.0
      %987 = vmatpush1.xpose.msra.mxu0 0.0
      %988 = vmatprep.subr.mxu0 0.0
      %989 = vmatpush1.xpose.msra.mxu0 0.0
      %990 = vmatprep.subr.mxu0 0.0
      %991 = vmatpush1.xpose.msra.mxu0 0.0
      %992 = vmatprep.subr.mxu0 0.0
      %993 = vmatpush1.xpose.msra.mxu0 0.0
      %994 = vmatprep.subr.mxu0 0.0
      %995 = vmatpush1.xpose.msra.mxu0 0.0
      %996 = vmatprep.subr.mxu0 0.0
      %997 = vmatpush1.xpose.msra.mxu0 0.0
      %998 = vmatprep.subr.mxu0 0.0
      %999 = vmatpush1.xpose.msra.mxu0 0.0
      %1000 = vmatprep.subr.mxu0 0.0
      %1001 = vmatpush1.xpose.msra.mxu0 0.0
      %1002 = vmatprep.subr.mxu0 0.0
      %1003 = vmatpush1.xpose.msra.mxu0 0.0
      %1004 = vmatprep.subr.mxu0 0.0
      %1005 = vmatpush1.xpose.msra.mxu0 0.0
      %1006 = vmatprep.subr.mxu0 0.0
      %1007 = vmatpush1.xpose.msra.mxu0 0.0
      %1008 = vmatprep.subr.mxu0 0.0
      %1009 = vmatpush1.xpose.msra.mxu0 0.0
      %1010 = vmatprep.subr.mxu0 0.0
      %1011 = vmatpush1.xpose.msra.mxu0 0.0
      %1012 = vmatprep.subr.mxu0 0.0
      %1013 = vmatpush1.xpose.msra.mxu0 0.0
      %1014 = vmatprep.mubr.f32.mxu0 0.0
      %1015 = vmatmul.mubr.f32.gmra.mrb[0].mxu0 %v946
      %v1016 = vpop.f32.mrb[0].mxu0
      %v1017 = vadd.f32 0.0, %v1016
      %v1018 = vpop.f32.mrb[0].mxu0
      %1019 = vdwg.mxu0
      %v1020 = vsel %vm196, %v1017, -inf
      %1021 = vmax.xlane.f32.xlu0 %v1020
      %v1022 = vpop.xlane.xlu0 %1021
      %v1023 = vsub.f32 %v1017, %v1022
      %v1024 = vmul.f32 %v1023, 1.442695
      %v1025 = vpow.pop %v1024
      %v1026 = vsel %vm196, %v1025, 0.0
      %1027 = vadd.xlane.f32.xlu0 %v1026
      %v1028 = vpop.xlane.xlu0 %1027
      %v1029 = vrcp.pop %v1028
      %v1030 = vmul.f32 %v1025, %v1029
      %1031 = vrot.lane.b32.xlu0 %v117, 48
      %v1032 = vpop.permute.xlu0 %1031
      %v1035 = vsel %vm196, %v1030, 0
      %1037 = vmatprep.subr.mxu0 0.0
      %1038 = vmatpush1.msra.mxu0 %v1032
      %1039 = vmatprep.subr.mxu0 0.0
      %1040 = vmatpush1.msra.mxu0 0.0
      %1041 = vmatprep.subr.mxu0 0.0
      %1042 = vmatpush1.msra.mxu0 0.0
      %1043 = vmatprep.subr.mxu0 0.0
      %1044 = vmatpush1.msra.mxu0 0.0
      %1045 = vmatprep.subr.mxu0 0.0
      %1046 = vmatpush1.msra.mxu0 0.0
      %1047 = vmatprep.subr.mxu0 0.0
      %1048 = vmatpush1.msra.mxu0 0.0
      %1049 = vmatprep.subr.mxu0 0.0
      %1050 = vmatpush1.msra.mxu0 0.0
      %1051 = vmatprep.subr.mxu0 0.0
      %1052 = vmatpush1.msra.mxu0 0.0
      %1053 = vmatprep.subr.mxu0 0.0
      %1054 = vmatpush1.msra.mxu0 0.0
      %1055 = vmatprep.subr.mxu0 0.0
      %1056 = vmatpush1.msra.mxu0 0.0
      %1057 = vmatprep.subr.mxu0 0.0
      %1058 = vmatpush1.msra.mxu0 0.0
      %1059 = vmatprep.subr.mxu0 0.0
      %1060 = vmatpush1.msra.mxu0 0.0
      %1061 = vmatprep.subr.mxu0 0.0
      %1062 = vmatpush1.msra.mxu0 0.0
      %1063 = vmatprep.subr.mxu0 0.0
      %1064 = vmatpush1.msra.mxu0 0.0
      %1065 = vmatprep.subr.mxu0 0.0
      %1066 = vmatpush1.msra.mxu0 0.0
      %1067 = vmatprep.subr.mxu0 0.0
      %1068 = vmatpush1.msra.mxu0 0.0
      %1069 = vmatprep.subr.mxu0 0.0
      %1070 = vmatpush1.msra.mxu0 0.0
      %1071 = vmatprep.subr.mxu0 0.0
      %1072 = vmatpush1.msra.mxu0 0.0
      %1073 = vmatprep.subr.mxu0 0.0
      %1074 = vmatpush1.msra.mxu0 0.0
      %1075 = vmatprep.subr.mxu0 0.0
      %1076 = vmatpush1.msra.mxu0 0.0
      %1077 = vmatprep.subr.mxu0 0.0
      %1078 = vmatpush1.msra.mxu0 0.0
      %1079 = vmatprep.subr.mxu0 0.0
      %1080 = vmatpush1.msra.mxu0 0.0
      %1081 = vmatprep.subr.mxu0 0.0
      %1082 = vmatpush1.msra.mxu0 0.0
      %1083 = vmatprep.subr.mxu0 0.0
      %1084 = vmatpush1.msra.mxu0 0.0
      %1085 = vmatprep.subr.mxu0 0.0
      %1086 = vmatpush1.msra.mxu0 0.0
      %1087 = vmatprep.subr.mxu0 0.0
      %1088 = vmatpush1.msra.mxu0 0.0
      %1089 = vmatprep.subr.mxu0 0.0
      %1090 = vmatpush1.msra.mxu0 0.0
      %1091 = vmatprep.subr.mxu0 0.0
      %1092 = vmatpush1.msra.mxu0 0.0
      %1093 = vmatprep.subr.mxu0 0.0
      %1094 = vmatpush1.msra.mxu0 0.0
      %1095 = vmatprep.subr.mxu0 0.0
      %1096 = vmatpush1.msra.mxu0 0.0
      %1097 = vmatprep.subr.mxu0 0.0
      %1098 = vmatpush1.msra.mxu0 0.0
      %1099 = vmatprep.subr.mxu0 0.0
      %1100 = vmatpush1.msra.mxu0 0.0
      %1101 = vmatprep.mubr.f32.mxu0 0.0
      %1102 = vmatmul.mubr.f32.gmra.mrb[0].mxu0 %v1035
      %v1103 = vpop.f32.mrb[0].mxu0
      %v1104 = vadd.f32 0.0, %v1103
      %v1105 = vpop.f32.mrb[0].mxu0
      %1106 = vdwg.mxu0
      %1107 = vrot.lane.b32.xlu0 %v118, 32
      %v1108 = vpop.permute.xlu0 %1107
      %1109 = vrot.lane.b32.xlu0 %v116, 32
      %v1110 = vpop.permute.xlu0 %1109
      %v1111 = vsel %vm119, %v1108, 0
      %v1113 = vsel %vm119, %v1110, 0
      %1115 = vmatprep.subr.mxu0 0.0
      %1116 = vmatpush1.xpose.msra.mxu0 %v1113
      %1117 = vmatprep.subr.mxu0 0.0
      %1118 = vmatpush1.xpose.msra.mxu0 0.0
      %1119 = vmatprep.subr.mxu0 0.0
      %1120 = vmatpush1.xpose.msra.mxu0 0.0
      %1121 = vmatprep.subr.mxu0 0.0
      %1122 = vmatpush1.xpose.msra.mxu0 0.0
      %1123 = vmatprep.subr.mxu0 0.0
      %1124 = vmatpush1.xpose.msra.mxu0 0.0
      %1125 = vmatprep.subr.mxu0 0.0
      %1126 = vmatpush1.xpose.msra.mxu0 0.0
      %1127 = vmatprep.subr.mxu0 0.0
      %1128 = vmatpush1.xpose.msra.mxu0 0.0
      %1129 = vmatprep.subr.mxu0 0.0
      %1130 = vmatpush1.xpose.msra.mxu0 0.0
      %1131 = vmatprep.subr.mxu0 0.0
      %1132 = vmatpush1.xpose.msra.mxu0 0.0
      %1133 = vmatprep.subr.mxu0 0.0
      %1134 = vmatpush1.xpose.msra.mxu0 0.0
      %1135 = vmatprep.subr.mxu0 0.0
      %1136 = vmatpush1.xpose.msra.mxu0 0.0
      %1137 = vmatprep.subr.mxu0 0.0
      %1138 = vmatpush1.xpose.msra.mxu0 0.0
      %1139 = vmatprep.subr.mxu0 0.0
      %1140 = vmatpush1.xpose.msra.mxu0 0.0
      %1141 = vmatprep.subr.mxu0 0.0
      %1142 = vmatpush1.xpose.msra.mxu0 0.0
      %1143 = vmatprep.subr.mxu0 0.0
      %1144 = vmatpush1.xpose.msra.mxu0 0.0
      %1145 = vmatprep.subr.mxu0 0.0
      %1146 = vmatpush1.xpose.msra.mxu0 0.0
      %1147 = vmatprep.subr.mxu0 0.0
      %1148 = vmatpush1.xpose.msra.mxu0 0.0
      %1149 = vmatprep.subr.mxu0 0.0
      %1150 = vmatpush1.xpose.msra.mxu0 0.0
      %1151 = vmatprep.subr.mxu0 0.0
      %1152 = vmatpush1.xpose.msra.mxu0 0.0
      %1153 = vmatprep.subr.mxu0 0.0
      %1154 = vmatpush1.xpose.msra.mxu0 0.0
      %1155 = vmatprep.subr.mxu0 0.0
      %1156 = vmatpush1.xpose.msra.mxu0 0.0
      %1157 = vmatprep.subr.mxu0 0.0
      %1158 = vmatpush1.xpose.msra.mxu0 0.0
      %1159 = vmatprep.subr.mxu0 0.0
      %1160 = vmatpush1.xpose.msra.mxu0 0.0
      %1161 = vmatprep.subr.mxu0 0.0
      %1162 = vmatpush1.xpose.msra.mxu0 0.0
      %1163 = vmatprep.subr.mxu0 0.0
      %1164 = vmatpush1.xpose.msra.mxu0 0.0
      %1165 = vmatprep.subr.mxu0 0.0
      %1166 = vmatpush1.xpose.msra.mxu0 0.0
      %1167 = vmatprep.subr.mxu0 0.0
      %1168 = vmatpush1.xpose.msra.mxu0 0.0
      %1169 = vmatprep.subr.mxu0 0.0
      %1170 = vmatpush1.xpose.msra.mxu0 0.0
      %1171 = vmatprep.subr.mxu0 0.0
      %1172 = vmatpush1.xpose.msra.mxu0 0.0
      %1173 = vmatprep.subr.mxu0 0.0
      %1174 = vmatpush1.xpose.msra.mxu0 0.0
      %1175 = vmatprep.subr.mxu0 0.0
      %1176 = vmatpush1.xpose.msra.mxu0 0.0
      %1177 = vmatprep.subr.mxu0 0.0
      %1178 = vmatpush1.xpose.msra.mxu0 0.0
      %1179 = vmatprep.mubr.f32.mxu0 0.0
      %1180 = vmatmul.mubr.f32.gmra.mrb[0].mxu0 %v1111
      %v1181 = vpop.f32.mrb[0].mxu0
      %v1182 = vadd.f32 0.0, %v1181
      %v1183 = vpop.f32.mrb[0].mxu0
      %1184 = vdwg.mxu0
      %v1185 = vsel %vm196, %v1182, -inf
      %1186 = vmax.xlane.f32.xlu0 %v1185
      %v1187 = vpop.xlane.xlu0 %1186
      %v1188 = vsub.f32 %v1182, %v1187
      %v1189 = vmul.f32 %v1188, 1.442695
      %v1190 = vpow.pop %v1189
      %v1191 = vsel %vm196, %v1190, 0.0
      %1192 = vadd.xlane.f32.xlu0 %v1191
      %v1193 = vpop.xlane.xlu0 %1192
      %v1194 = vrcp.pop %v1193
      %v1195 = vmul.f32 %v1190, %v1194
      %1196 = vrot.lane.b32.xlu0 %v117, 32
      %v1197 = vpop.permute.xlu0 %1196
      %v1200 = vsel %vm196, %v1195, 0
      %1202 = vmatprep.subr.mxu0 0.0
      %1203 = vmatpush1.msra.mxu0 %v1197
      %1204 = vmatprep.subr.mxu0 0.0
      %1205 = vmatpush1.msra.mxu0 0.0
      %1206 = vmatprep.subr.mxu0 0.0
      %1207 = vmatpush1.msra.mxu0 0.0
      %1208 = vmatprep.subr.mxu0 0.0
      %1209 = vmatpush1.msra.mxu0 0.0
      %1210 = vmatprep.subr.mxu0 0.0
      %1211 = vmatpush1.msra.mxu0 0.0
      %1212 = vmatprep.subr.mxu0 0.0
      %1213 = vmatpush1.msra.mxu0 0.0
      %1214 = vmatprep.subr.mxu0 0.0
      %1215 = vmatpush1.msra.mxu0 0.0
      %1216 = vmatprep.subr.mxu0 0.0
      %1217 = vmatpush1.msra.mxu0 0.0
      %1218 = vmatprep.subr.mxu0 0.0
      %1219 = vmatpush1.msra.mxu0 0.0
      %1220 = vmatprep.subr.mxu0 0.0
      %1221 = vmatpush1.msra.mxu0 0.0
      %1222 = vmatprep.subr.mxu0 0.0
      %1223 = vmatpush1.msra.mxu0 0.0
      %1224 = vmatprep.subr.mxu0 0.0
      %1225 = vmatpush1.msra.mxu0 0.0
      %1226 = vmatprep.subr.mxu0 0.0
      %1227 = vmatpush1.msra.mxu0 0.0
      %1228 = vmatprep.subr.mxu0 0.0
      %1229 = vmatpush1.msra.mxu0 0.0
      %1230 = vmatprep.subr.mxu0 0.0
      %1231 = vmatpush1.msra.mxu0 0.0
      %1232 = vmatprep.subr.mxu0 0.0
      %1233 = vmatpush1.msra.mxu0 0.0
      %1234 = vmatprep.subr.mxu0 0.0
      %1235 = vmatpush1.msra.mxu0 0.0
      %1236 = vmatprep.subr.mxu0 0.0
      %1237 = vmatpush1.msra.mxu0 0.0
      %1238 = vmatprep.subr.mxu0 0.0
      %1239 = vmatpush1.msra.mxu0 0.0
      %1240 = vmatprep.subr.mxu0 0.0
      %1241 = vmatpush1.msra.mxu0 0.0
      %1242 = vmatprep.subr.mxu0 0.0
      %1243 = vmatpush1.msra.mxu0 0.0
      %1244 = vmatprep.subr.mxu0 0.0
      %1245 = vmatpush1.msra.mxu0 0.0
      %1246 = vmatprep.subr.mxu0 0.0
      %1247 = vmatpush1.msra.mxu0 0.0
      %1248 = vmatprep.subr.mxu0 0.0
      %1249 = vmatpush1.msra.mxu0 0.0
      %1250 = vmatprep.subr.mxu0 0.0
      %1251 = vmatpush1.msra.mxu0 0.0
      %1252 = vmatprep.subr.mxu0 0.0
      %1253 = vmatpush1.msra.mxu0 0.0
      %1254 = vmatprep.subr.mxu0 0.0
      %1255 = vmatpush1.msra.mxu0 0.0
      %1256 = vmatprep.subr.mxu0 0.0
      %1257 = vmatpush1.msra.mxu0 0.0
      %1258 = vmatprep.subr.mxu0 0.0
      %1259 = vmatpush1.msra.mxu0 0.0
      %1260 = vmatprep.subr.mxu0 0.0
      %1261 = vmatpush1.msra.mxu0 0.0
      %1262 = vmatprep.subr.mxu0 0.0
      %1263 = vmatpush1.msra.mxu0 0.0
      %1264 = vmatprep.subr.mxu0 0.0
      %1265 = vmatpush1.msra.mxu0 0.0
      %1266 = vmatprep.mubr.f32.mxu0 0.0
      %1267 = vmatmul.mubr.f32.gmra.mrb[0].mxu0 %v1200
      %v1268 = vpop.f32.mrb[0].mxu0
      %v1269 = vadd.f32 0.0, %v1268
      %v1270 = vpop.f32.mrb[0].mxu0
      %1271 = vdwg.mxu0
      %1272 = vrot.lane.b32.xlu0 %v118, 16
      %v1273 = vpop.permute.xlu0 %1272
      %1274 = vrot.lane.b32.xlu0 %v116, 16
      %v1275 = vpop.permute.xlu0 %1274
      %v1276 = vsel %vm119, %v1273, 0
      %v1278 = vsel %vm119, %v1275, 0
      %1280 = vmatprep.subr.mxu0 0.0
      %1281 = vmatpush1.xpose.msra.mxu0 %v1278
      %1282 = vmatprep.subr.mxu0 0.0
      %1283 = vmatpush1.xpose.msra.mxu0 0.0
      %1284 = vmatprep.subr.mxu0 0.0
      %1285 = vmatpush1.xpose.msra.mxu0 0.0
      %1286 = vmatprep.subr.mxu0 0.0
      %1287 = vmatpush1.xpose.msra.mxu0 0.0
      %1288 = vmatprep.subr.mxu0 0.0
      %1289 = vmatpush1.xpose.msra.mxu0 0.0
      %1290 = vmatprep.subr.mxu0 0.0
      %1291 = vmatpush1.xpose.msra.mxu0 0.0
      %1292 = vmatprep.subr.mxu0 0.0
      %1293 = vmatpush1.xpose.msra.mxu0 0.0
      %1294 = vmatprep.subr.mxu0 0.0
      %1295 = vmatpush1.xpose.msra.mxu0 0.0
      %1296 = vmatprep.subr.mxu0 0.0
      %1297 = vmatpush1.xpose.msra.mxu0 0.0
      %1298 = vmatprep.subr.mxu0 0.0
      %1299 = vmatpush1.xpose.msra.mxu0 0.0
      %1300 = vmatprep.subr.mxu0 0.0
      %1301 = vmatpush1.xpose.msra.mxu0 0.0
      %1302 = vmatprep.subr.mxu0 0.0
      %1303 = vmatpush1.xpose.msra.mxu0 0.0
      %1304 = vmatprep.subr.mxu0 0.0
      %1305 = vmatpush1.xpose.msra.mxu0 0.0
      %1306 = vmatprep.subr.mxu0 0.0
      %1307 = vmatpush1.xpose.msra.mxu0 0.0
      %1308 = vmatprep.subr.mxu0 0.0
      %1309 = vmatpush1.xpose.msra.mxu0 0.0
      %1310 = vmatprep.subr.mxu0 0.0
      %1311 = vmatpush1.xpose.msra.mxu0 0.0
      %1312 = vmatprep.subr.mxu0 0.0
      %1313 = vmatpush1.xpose.msra.mxu0 0.0
      %1314 = vmatprep.subr.mxu0 0.0
      %1315 = vmatpush1.xpose.msra.mxu0 0.0
      %1316 = vmatprep.subr.mxu0 0.0
      %1317 = vmatpush1.xpose.msra.mxu0 0.0
      %1318 = vmatprep.subr.mxu0 0.0
      %1319 = vmatpush1.xpose.msra.mxu0 0.0
      %1320 = vmatprep.subr.mxu0 0.0
      %1321 = vmatpush1.xpose.msra.mxu0 0.0
      %1322 = vmatprep.subr.mxu0 0.0
      %1323 = vmatpush1.xpose.msra.mxu0 0.0
      %1324 = vmatprep.subr.mxu0 0.0
      %1325 = vmatpush1.xpose.msra.mxu0 0.0
      %1326 = vmatprep.subr.mxu0 0.0
      %1327 = vmatpush1.xpose.msra.mxu0 0.0
      %1328 = vmatprep.subr.mxu0 0.0
      %1329 = vmatpush1.xpose.msra.mxu0 0.0
      %1330 = vmatprep.subr.mxu0 0.0
      %1331 = vmatpush1.xpose.msra.mxu0 0.0
      %1332 = vmatprep.subr.mxu0 0.0
      %1333 = vmatpush1.xpose.msra.mxu0 0.0
      %1334 = vmatprep.subr.mxu0 0.0
      %1335 = vmatpush1.xpose.msra.mxu0 0.0
      %1336 = vmatprep.subr.mxu0 0.0
      %1337 = vmatpush1.xpose.msra.mxu0 0.0
      %1338 = vmatprep.subr.mxu0 0.0
      %1339 = vmatpush1.xpose.msra.mxu0 0.0
      %1340 = vmatprep.subr.mxu0 0.0
      %1341 = vmatpush1.xpose.msra.mxu0 0.0
      %1342 = vmatprep.subr.mxu0 0.0
      %1343 = vmatpush1.xpose.msra.mxu0 0.0
      %1344 = vmatprep.mubr.f32.mxu0 0.0
      %1345 = vmatmul.mubr.f32.gmra.mrb[0].mxu0 %v1276
      %v1346 = vpop.f32.mrb[0].mxu0
      %v1347 = vadd.f32 0.0, %v1346
      %v1348 = vpop.f32.mrb[0].mxu0
      %1349 = vdwg.mxu0
      %v1350 = vsel %vm196, %v1347, -inf
      %1351 = vmax.xlane.f32.xlu0 %v1350
      %v1352 = vpop.xlane.xlu0 %1351
      %v1353 = vsub.f32 %v1347, %v1352
      %v1354 = vmul.f32 %v1353, 1.442695
      %v1355 = vpow.pop %v1354
      %v1356 = vsel %vm196, %v1355, 0.0
      %1357 = vadd.xlane.f32.xlu0 %v1356
      %v1358 = vpop.xlane.xlu0 %1357
      %v1359 = vrcp.pop %v1358
      %v1360 = vmul.f32 %v1355, %v1359
      %1361 = vrot.lane.b32.xlu0 %v117, 16
      %v1362 = vpop.permute.xlu0 %1361
      %v1365 = vsel %vm196, %v1360, 0
      %1367 = vmatprep.subr.mxu0 0.0
      %1368 = vmatpush1.msra.mxu0 %v1362
      %1369 = vmatprep.subr.mxu0 0.0
      %1370 = vmatpush1.msra.mxu0 0.0
      %1371 = vmatprep.subr.mxu0 0.0
      %1372 = vmatpush1.msra.mxu0 0.0
      %1373 = vmatprep.subr.mxu0 0.0
      %1374 = vmatpush1.msra.mxu0 0.0
      %1375 = vmatprep.subr.mxu0 0.0
      %1376 = vmatpush1.msra.mxu0 0.0
      %1377 = vmatprep.subr.mxu0 0.0
      %1378 = vmatpush1.msra.mxu0 0.0
      %1379 = vmatprep.subr.mxu0 0.0
      %1380 = vmatpush1.msra.mxu0 0.0
      %1381 = vmatprep.subr.mxu0 0.0
      %1382 = vmatpush1.msra.mxu0 0.0
      %1383 = vmatprep.subr.mxu0 0.0
      %1384 = vmatpush1.msra.mxu0 0.0
      %1385 = vmatprep.subr.mxu0 0.0
      %1386 = vmatpush1.msra.mxu0 0.0
      %1387 = vmatprep.subr.mxu0 0.0
      %1388 = vmatpush1.msra.mxu0 0.0
      %1389 = vmatprep.subr.mxu0 0.0
      %1390 = vmatpush1.msra.mxu0 0.0
      %1391 = vmatprep.subr.mxu0 0.0
      %1392 = vmatpush1.msra.mxu0 0.0
      %1393 = vmatprep.subr.mxu0 0.0
      %1394 = vmatpush1.msra.mxu0 0.0
      %1395 = vmatprep.subr.mxu0 0.0
      %1396 = vmatpush1.msra.mxu0 0.0
      %1397 = vmatprep.subr.mxu0 0.0
      %1398 = vmatpush1.msra.mxu0 0.0
      %1399 = vmatprep.subr.mxu0 0.0
      %1400 = vmatpush1.msra.mxu0 0.0
      %1401 = vmatprep.subr.mxu0 0.0
      %1402 = vmatpush1.msra.mxu0 0.0
      %1403 = vmatprep.subr.mxu0 0.0
      %1404 = vmatpush1.msra.mxu0 0.0
      %1405 = vmatprep.subr.mxu0 0.0
      %1406 = vmatpush1.msra.mxu0 0.0
      %1407 = vmatprep.subr.mxu0 0.0
      %1408 = vmatpush1.msra.mxu0 0.0
      %1409 = vmatprep.subr.mxu0 0.0
      %1410 = vmatpush1.msra.mxu0 0.0
      %1411 = vmatprep.subr.mxu0 0.0
      %1412 = vmatpush1.msra.mxu0 0.0
      %1413 = vmatprep.subr.mxu0 0.0
      %1414 = vmatpush1.msra.mxu0 0.0
      %1415 = vmatprep.subr.mxu0 0.0
      %1416 = vmatpush1.msra.mxu0 0.0
      %1417 = vmatprep.subr.mxu0 0.0
      %1418 = vmatpush1.msra.mxu0 0.0
      %1419 = vmatprep.subr.mxu0 0.0
      %1420 = vmatpush1.msra.mxu0 0.0
      %1421 = vmatprep.subr.mxu0 0.0
      %1422 = vmatpush1.msra.mxu0 0.0
      %1423 = vmatprep.subr.mxu0 0.0
      %1424 = vmatpush1.msra.mxu0 0.0
      %1425 = vmatprep.subr.mxu0 0.0
      %1426 = vmatpush1.msra.mxu0 0.0
      %1427 = vmatprep.subr.mxu0 0.0
      %1428 = vmatpush1.msra.mxu0 0.0
      %1429 = vmatprep.subr.mxu0 0.0
      %1430 = vmatpush1.msra.mxu0 0.0
      %1431 = vmatprep.mubr.f32.mxu0 0.0
      %1432 = vmatmul.mubr.f32.gmra.mrb[0].mxu0 %v1365
      %v1433 = vpop.f32.mrb[0].mxu0
      %v1434 = vadd.f32 0.0, %v1433
      %v1435 = vpop.f32.mrb[0].mxu0
      %1436 = vdwg.mxu0
      %1438 = vrot.lane.b32.xlu0 %v444, 16
      %v1439 = vpop.permute.xlu0 %1438
      %1442 = vrot.lane.b32.xlu0 %v609, 32
      %v1443 = vpop.permute.xlu0 %1442
      %1446 = vrot.lane.b32.xlu0 %v774, 48
      %v1447 = vpop.permute.xlu0 %1446
      %1450 = vrot.lane.b32.xlu0 %v939, 64
      %v1451 = vpop.permute.xlu0 %1450
      %1454 = vrot.lane.b32.xlu0 %v1104, 80
      %v1455 = vpop.permute.xlu0 %1454
      %1458 = vrot.lane.b32.xlu0 %v1269, 96
      %v1459 = vpop.permute.xlu0 %1458
      %1462 = vrot.lane.b32.xlu0 %v1434, 112
      %v1463 = vpop.permute.xlu0 %1462
      %v1465 = vsel %vm119, %v278, %v1439
      %vm1466 = vcmask 261120
      %v1467 = vsel %vm1466, %v1465, %v1443
      %vm1468 = vcmask 392192
      %v1469 = vsel %vm1468, %v1467, %v1447
      %vm1470 = vcmask 523264
      %v1471 = vsel %vm1470, %v1469, %v1451
      %vm1472 = vcmask 654336
      %v1473 = vsel %vm1472, %v1471, %v1455
      %vm1474 = vcmask 785408
      %v1475 = vsel %vm1474, %v1473, %v1459
      %vm1476 = vcmask 916480
      %v1477 = vsel %vm1476, %v1475, %v1463
      %1478 = vst [vmem:[%s114] sm:$0xff] %v1477
      %p1479 = scmp.lt.s32.totalorder %s12, 1
      %s1480 = scalar_select %p1479, %s12, 1
      %s1481 = smul.addr %s1480, 8
      %s1482 = scalar_lea.vmem %s1, %s1481
      // Predicated region
      $region25: #{dim_proj_attention_forward.4} parent=23 // pred_check
        %p1483 = pneg %p56
      $region26: #{dim_proj_attention_forward.4} parent=23 // pred_check_branch
        %1485 = sbr.rel (%p1483) target = $region28
      $region27: #{dim_proj_attention_forward.4} parent=23 // pred_region
        _
      $region28: #{dim_proj_attention_forward.4} parent=23 // pred_fallthru
        _
    $region24: #{dim_proj_attention_forward.4} parent=5 // pred_fallthru
      _
    %p1486 = scmp.le.s32.totalorder 2, %s7
    // Predicated region
    $region29: #{dim_proj_attention_forward.4} parent=5 // pred_check
      %p1487 = pneg %p1486
    $region30: #{dim_proj_attention_forward.4} parent=5 // pred_check_branch
      %1489 = sbr.rel (%p1487) target = $region32
    $region31: #{dim_proj_attention_forward.4} parent=5 // pred_region
      %s1490 = ssub.s32 %s7, 2
      // Predicated region
      $region33: #{dim_proj_attention_forward.4} parent=31 // pred_check
        %p1491 = pneg %p62
      $region34: #{dim_proj_attention_forward.4} parent=31 // pred_check_branch
        %1493 = sbr.rel (%p1491) target = $region36
      $region35: #{dim_proj_attention_forward.4} parent=31 // pred_region
        %p1494 = scmp.lt.s32.totalorder %s13, 1
        %s1495 = scalar_select %p1494, %s13, 1
        %s1496 = smul.addr %s1495, 8
        %s1497 = scalar_lea.vmem %s1, %s1496
      $region36: #{dim_proj_attention_forward.4} parent=31 // pred_fallthru
        _
    $region32: #{dim_proj_attention_forward.4} parent=5 // pred_fallthru
      _
  $region6: #{dim_proj_attention_forward.4} parent=0 // loop_footer
    %s11 = sadd.s32 1, %s7
  $region7: #{dim_proj_attention_forward.4} parent=0 // loop_footer_branch
    %6 = sbr.rel target = $region3
  $region8: #{dim_proj_attention_forward.4} parent=0 // loop_exit
    _

</llo_original>
